<compile_context>
chip_gen: v7x
topology: tpu7x:2x2x1
jax: 0.10.0
libtpu: 0.0.40
codegen_flags: <defaults>
</compile_context>

<pallas_src>
import jax
import jax.numpy as jnp
import numpy as np
from jax import lax
from jax.experimental import pallas as pl
from jax.experimental.pallas import tpu as pltpu

_LANES = 128


def _gfno_encoder_kernel(ublk_ref, w1_ref, w2_ref, u_ref, x_ref, out_ref):
    """Processes one 128-wide batch lane-group.

    ublk: (K*Cin, Cin*N)   bf16   (I_Cin (x) U^T, forward transform operator)
    w1:   (K*hidden, K*Cin)   bf16 (block-diagonal conv1 weight)
    w2:   (K*hidden, K*hidden) bf16 (block-diagonal conv2 weight)
    u:    (N, K)           bf16   (inverse transform basis)
    x:    (Cin*N, Bb)      bf16   (Bb = 128 batch columns; x[c*N+n, b] = X[b, n, c])
    out:  (N, hidden*Bb)   f32    (out[n, o*Bb+b] = out_sample[b, n, o])
    """
    K = u_ref.shape[1]
    hidden = w1_ref.shape[0] // K
    bb = x_ref.shape[1]

    def mm(a, b):  # ordinary matmul, f32 accumulation on the MXU
        return lax.dot_general(a, b, (((1,), (0,)), ((), ())),
                               preferred_element_type=jnp.float32)

    # 1) Graph Fourier transform of all Bb samples at once: (K*Cin,Cin*N)@(Cin*N,Bb).
    xh = mm(ublk_ref[...], x_ref[...])                        # (K*Cin, Bb) f32

    # 2) SpectralConv1 (block-diag packed) + ReLU (f32 VPU).
    yh = mm(w1_ref[...], xh.astype(w1_ref.dtype))             # (K*hidden, Bb) f32
    yh = jnp.maximum(yh, 0.0)
    # TODO(synk): F.dropout is identity in eval mode; training-mode RNG mask
    # (pltpu.prng_random_bits + rescale) intentionally omitted.

    # 3) SpectralConv2 (block-diag packed).
    zh = mm(w2_ref[...], yh.astype(w2_ref.dtype))             # (K*hidden, Bb) f32

    # 4) Inverse transform.  The (K*hidden, Bb) -> (K, hidden*Bb) step is a real
    #    sublane->lane relayout (~128 KiB), kept deliberately (cheaper here than the
    #    I_hidden (x) U alternative).  The first reshape is a free major-dim split.
    zc = zh.reshape(K, hidden, bb).reshape(K, hidden * bb).astype(u_ref.dtype)
    out_ref[...] = mm(u_ref[...], zc).astype(out_ref.dtype)   # (N, hidden*Bb)


def pack_gfno_params(U, W1, W2, dtype=jnp.bfloat16):
    """One-time (init) packing of the basis and PyTorch-layout SpectralConv weights.

    U:  (N, K)              graph-Fourier basis (fixed buffer)
    W1: (Cin, hidden, K)    conv1.weight, PyTorch layout
    W2: (hidden, hidden, K) conv2.weight, PyTorch layout

    Returns (all cast to bf16 for single-pass MXU issue):
      Ublk : (K*Cin, Cin*N)      Ublk[k*Cin+c, c'*N+n] = delta(c,c') * U[n,k]
      W1blk: (K*hidden, K*Cin)   W1blk[k*h+o, k'*Cin+c] = delta(k,k') * W1[c,o,k]
      W2blk: (K*hidden, K*hidden)
      Ub   : (N, K)              basis for the inverse transform
    """
    N, K = U.shape
    Cin = W1.shape[0]

    def blkdiag(w):  # w: (c, o, K) torch layout -> (K*o, K*c) block-diagonal
        c, o, k = w.shape
        wt = jnp.transpose(w, (2, 1, 0))                     # (K, o, c)
        eye = jnp.eye(k, dtype=wt.dtype)
        return (eye[:, None, :, None] * wt[:, :, None, :]).reshape(k * o, k * c)

    Ut = U.T                                                 # (K, N)
    eye_c = jnp.eye(Cin, dtype=U.dtype)
    Ublk = (eye_c[None, :, :, None] * Ut[:, None, None, :]).reshape(K * Cin, Cin * N)

    return (Ublk.astype(dtype), blkdiag(W1).astype(dtype),
            blkdiag(W2).astype(dtype), U.astype(dtype))


def gfno_encoder(X, Ublk, W1blk, W2blk, Ub):
    """Batched GFNOEncoder forward.

    X: (B, N, Cin); packed params from pack_gfno_params.  Returns (B, N, hidden),
    each sample matching the PyTorch module forward (eval mode).
    """
    B, N, Cin = X.shape
    K = Ub.shape[1]
    hidden = W1blk.shape[0] // K

    # Pad the batch to a multiple of 128 so it exactly fills lane groups.
    Bp = max(_LANES, ((B + _LANES - 1) // _LANES) * _LANES)
    if Bp != B:
        X = jnp.pad(X, ((0, Bp - B), (0, 0), (0, 0)))
    G = Bp // _LANES

    # Layout plumbing (XLA side): fold batch onto lanes, channel-major rows:
    # X_flat[c*N + n, b] = X[b, n, c]; cast to bf16 to halve the HBM->VMEM DMA.
    X_flat = jnp.transpose(X, (2, 1, 0)).reshape(Cin * N, Bp).astype(jnp.bfloat16)

    out = pl.pallas_call(
        _gfno_encoder_kernel,
        out_shape=jax.ShapeDtypeStruct((G, N, hidden * _LANES), jnp.float32),
        grid=(G,),
        in_specs=[
            pl.BlockSpec(Ublk.shape, lambda g: (0, 0)),      # VMEM-resident operators
            pl.BlockSpec(W1blk.shape, lambda g: (0, 0)),
            pl.BlockSpec(W2blk.shape, lambda g: (0, 0)),
            pl.BlockSpec(Ub.shape, lambda g: (0, 0)),
            pl.BlockSpec((Cin * N, _LANES), lambda g: (0, g)),  # per-step batch block
        ],
        out_specs=pl.BlockSpec((None, N, hidden * _LANES), lambda g: (g, 0, 0)),
        compiler_params=pltpu.CompilerParams(dimension_semantics=("parallel",)),
    )(Ublk, W1blk, W2blk, Ub, X_flat)

    # out[g, n, o*128 + lb] = y[g*128 + lb, n, o]; back to (B, N, hidden) for API
    # parity with the PyTorch module (skip if batch-minor layout is acceptable).
    out = out.reshape(G, N, hidden, _LANES).transpose(0, 3, 1, 2).reshape(Bp, N, hidden)
    return out[:B]


def _xavier_uniform(key, shape):
    # PyTorch xavier_uniform_ on a 3D tensor (Cin, Cout, K):
    # fan_in = size(1) * K, fan_out = size(0) * K.
    fan_in = shape[1] * shape[2]
    fan_out = shape[0] * shape[2]
    bound = (6.0 / (fan_in + fan_out)) ** 0.5
    return jax.random.uniform(key, shape, jnp.float32, -bound, bound)


if __name__ == "__main__":
    B, N, Cin, hidden, K = 128, 64, 4, 32, 8

    key = jax.random.PRNGKey(0)
    k_x, k_u, k_w1, k_w2 = jax.random.split(key, 4)
    X = jax.random.normal(k_x, (B, N, Cin), jnp.float32)
    U = jax.random.normal(k_u, (N, K), jnp.float32)        # precomputed basis buffer
    W1 = _xavier_uniform(k_w1, (Cin, hidden, K))            # conv1.weight (torch layout)
    W2 = _xavier_uniform(k_w2, (hidden, hidden, K))         # conv2.weight (torch layout)

    # One-time packing ("init"), outside the per-call hot path.
    Ublk, W1blk, W2blk, Ub = pack_gfno_params(U, W1, W2)

    fwd = jax.jit(gfno_encoder)
    out = jax.block_until_ready(fwd(X, Ublk, W1blk, W2blk, Ub))

    # float64 NumPy reference (exact math).  The kernel uses bf16 MXU inputs with
    # f32 accumulation, so compare on a scale-relative basis.
    Xn, Un = np.asarray(X, np.float64), np.asarray(U, np.float64)
    W1n, W2n = np.asarray(W1, np.float64), np.asarray(W2, np.float64)
    Xh = np.einsum('nk,bnc->bkc', Un, Xn)
    Yh = np.maximum(np.einsum('cok,bkc->bko', W1n, Xh), 0.0)
    Zh = np.einsum('cok,bkc->bko', W2n, Yh)
    ref = np.einsum('nk,bko->bno', Un, Zh)

    assert out.shape == (B, N, hidden)
    err = float(np.max(np.abs(np.asarray(out, np.float64) - ref)))
    scale = float(np.max(np.abs(ref)))
    assert err <= 2e-2 * scale, (err, scale)
    print("KERNEL_OK")
</pallas_src>

<mosaic_0001>
module attributes {stable_mosaic.version = 11 : i64} {
  func.func @_gfno_encoder_kernel(%arg0: i32, %arg1: memref<32x256xbf16, #tpu.memory_space<vmem>>, %arg2: memref<256x32xbf16, #tpu.memory_space<vmem>>, %arg3: memref<256x256xbf16, #tpu.memory_space<vmem>>, %arg4: memref<64x8xbf16, #tpu.memory_space<vmem>>, %arg5: memref<256x128xbf16, #tpu.memory_space<vmem>>, %arg6: memref<1x64x4096xf32, #tpu.memory_space<vmem>>) attributes {dimension_semantics = [#tpu.dimension_semantics<parallel>], iteration_bounds = array<i64: 1>, scalar_prefetch = 0 : i64, scratch_operands = 0 : i64, tpu.core_type = #tpu.core_type<tc>, window_params = [{pipeline_mode = #tpu.pipeline_mode<synchronous>, transform_indices = @transform_0, window_bounds = array<i64: 32, 256>}, {pipeline_mode = #tpu.pipeline_mode<synchronous>, transform_indices = @transform_1, window_bounds = array<i64: 256, 32>}, {pipeline_mode = #tpu.pipeline_mode<synchronous>, transform_indices = @transform_2, window_bounds = array<i64: 256, 256>}, {pipeline_mode = #tpu.pipeline_mode<synchronous>, transform_indices = @transform_3, window_bounds = array<i64: 64, 8>}, {transform_indices = @transform_4, window_bounds = array<i64: 256, 128>}, {transform_indices = @transform_5, window_bounds = array<i64: 1, 64, 4096>}]} {
    %c0 = arith.constant 0 : index
    %c0_0 = arith.constant 0 : index
    %0 = vector.load %arg1[%c0, %c0_0] : memref<32x256xbf16, #tpu.memory_space<vmem>>, vector<32x256xbf16>
    %c0_1 = arith.constant 0 : index
    %c0_2 = arith.constant 0 : index
    %1 = vector.load %arg5[%c0_1, %c0_2] : memref<256x128xbf16, #tpu.memory_space<vmem>>, vector<256x128xbf16>
    %cst = arith.constant dense<0.000000e+00> : vector<32x128xf32>
    %2 = tpu.matmul %0, %1, %cst {dimension_numbers = #tpu.dot_dimension_numbers<[1], [0], [0], [1], [0, 0, 1, 1], [], []>} : vector<32x256xbf16>, vector<256x128xbf16>, vector<32x128xf32> -> vector<32x128xf32>
    %c0_3 = arith.constant 0 : index
    %c0_4 = arith.constant 0 : index
    %3 = vector.load %arg2[%c0_3, %c0_4] : memref<256x32xbf16, #tpu.memory_space<vmem>>, vector<256x32xbf16>
    %4 = arith.truncf %2 : vector<32x128xf32> to vector<32x128xbf16>
    %cst_5 = arith.constant dense<0.000000e+00> : vector<256x128xf32>
    %5 = tpu.matmul %3, %4, %cst_5 {dimension_numbers = #tpu.dot_dimension_numbers<[1], [0], [0], [1], [0, 0, 1, 1], [], []>} : vector<256x32xbf16>, vector<32x128xbf16>, vector<256x128xf32> -> vector<256x128xf32>
    %cst_6 = arith.constant 0.000000e+00 : f32
    %6 = vector.broadcast %cst_6 : f32 to vector<256x128xf32>
    %7 = arith.maximumf %5, %6 : vector<256x128xf32>
    %c0_7 = arith.constant 0 : index
    %c0_8 = arith.constant 0 : index
    %8 = vector.load %arg3[%c0_7, %c0_8] : memref<256x256xbf16, #tpu.memory_space<vmem>>, vector<256x256xbf16>
    %9 = arith.truncf %7 : vector<256x128xf32> to vector<256x128xbf16>
    %cst_9 = arith.constant dense<0.000000e+00> : vector<256x128xf32>
    %10 = tpu.matmul %8, %9, %cst_9 {dimension_numbers = #tpu.dot_dimension_numbers<[1], [0], [0], [1], [0, 0, 1, 1], [], []>} : vector<256x256xbf16>, vector<256x128xbf16>, vector<256x128xf32> -> vector<256x128xf32>
    %11 = vector.shape_cast %10 : vector<256x128xf32> to vector<8x32x128xf32>
    %12 = vector.shape_cast %11 : vector<8x32x128xf32> to vector<8x4096xf32>
    %13 = arith.truncf %12 : vector<8x4096xf32> to vector<8x4096xbf16>
    %c0_10 = arith.constant 0 : index
    %c0_11 = arith.constant 0 : index
    %14 = vector.load %arg4[%c0_10, %c0_11] : memref<64x8xbf16, #tpu.memory_space<vmem>>, vector<64x8xbf16>
    %cst_12 = arith.constant dense<0.000000e+00> : vector<64x4096xf32>
    %15 = tpu.matmul %14, %13, %cst_12 {dimension_numbers = #tpu.dot_dimension_numbers<[1], [0], [0], [1], [0, 0, 1, 1], [], []>} : vector<64x8xbf16>, vector<8x4096xbf16>, vector<64x4096xf32> -> vector<64x4096xf32>
    %c0_13 = arith.constant 0 : index
    %c0_14 = arith.constant 0 : index
    %c0_15 = arith.constant 0 : index
    %16 = vector.load %arg6[%c0_13, %c0_14, %c0_15] : memref<1x64x4096xf32, #tpu.memory_space<vmem>>, vector<1x64x4096xf32>
    %17 = vector.shape_cast %16 : vector<1x64x4096xf32> to vector<64x4096xf32>
    %18 = vector.shape_cast %15 : vector<64x4096xf32> to vector<1x64x4096xf32>
    tpu.vector_store %arg6[%c0_13, %c0_14, %c0_15], %18 {strides = array<i32>} : memref<1x64x4096xf32, #tpu.memory_space<vmem>>, vector<1x64x4096xf32>,
    return
  }
  func.func @transform_0(%arg0: i32) -> (i32, i32) {
    %c0_i32 = arith.constant 0 : i32
    %c0_i32_0 = arith.constant 0 : i32
    %c0_i32_1 = arith.constant 0 : i32
    return %c0_i32, %c0_i32_0 : i32, i32
  }
  func.func @transform_1(%arg0: i32) -> (i32, i32) {
    %c0_i32 = arith.constant 0 : i32
    %c0_i32_0 = arith.constant 0 : i32
    %c0_i32_1 = arith.constant 0 : i32
    return %c0_i32, %c0_i32_0 : i32, i32
  }
  func.func @transform_2(%arg0: i32) -> (i32, i32) {
    %c0_i32 = arith.constant 0 : i32
    %c0_i32_0 = arith.constant 0 : i32
    %c0_i32_1 = arith.constant 0 : i32
    return %c0_i32, %c0_i32_0 : i32, i32
  }
  func.func @transform_3(%arg0: i32) -> (i32, i32) {
    %c0_i32 = arith.constant 0 : i32
    %c0_i32_0 = arith.constant 0 : i32
    %c0_i32_1 = arith.constant 0 : i32
    return %c0_i32, %c0_i32_0 : i32, i32
  }
  func.func @transform_4(%arg0: i32) -> (i32, i32) {
    %c0_i32 = arith.constant 0 : i32
    %c0_i32_0 = arith.constant 0 : i32
    return %c0_i32, %arg0 : i32, i32
  }
  func.func @transform_5(%arg0: i32) -> (i32, i32, i32) {
    %c0_i32 = arith.constant 0 : i32
    %c0_i32_0 = arith.constant 0 : i32
    %c0_i32_1 = arith.constant 0 : i32
    return %arg0, %c0_i32, %c0_i32_0 : i32, i32, i32
  }
}

</mosaic_0001>

<llo_original>
// kernel: gfno_encoder.1
$region0: #{gfno_encoder.1}
  #allocation0 [shape = 'u32[]', space=smem, size = 0x4, offset = 0x4, fixed_abs, tag = 'smem constant byte address 0x4 - core index']
  #allocation1 [shape = 'u32[144,128]{1,0:T(1,128)}', space=vmem, size = 0x12000, scoped, tag = 'internal scratch']
  %s0 = inlined_call_operand.vmem [shape: bf16[32,256], index: 0, kind: input, shape index: {}]
  %s1 = inlined_call_operand.vmem [shape: bf16[256,32], index: 1, kind: input, shape index: {}]
  %s2 = inlined_call_operand.vmem [shape: bf16[256,256], index: 2, kind: input, shape index: {}]
  %s3 = inlined_call_operand.vmem [shape: bf16[64,8], index: 3, kind: input, shape index: {}]
  %s4 = inlined_call_operand.vmem [shape: bf16[256,128], index: 4, kind: input, shape index: {}]
  %s5 = inlined_call_operand.vmem [shape: f32[1,64,4096], index: 5, kind: output, shape index: {}]
  %s6 = sld [smem:[#allocation0]]
  $region30: #{gfno_encoder.1} parent=0
    _
  %s8 = ssub.s32 1, %s6
  %s9 = scalar_select 0, %s8, %s6
  // Predicated region
  $region2: #{gfno_encoder.1} parent=0 // pred_check
    _
  $region3: #{gfno_encoder.1} parent=0 // pred_check_branch
    %11 = sbr.rel (0) target = $region5
  $region4: #{gfno_encoder.1} parent=0 // pred_region
    _
  $region5: #{gfno_encoder.1} parent=0 // pred_fallthru
    _
  // Predicated region
  $region6: #{gfno_encoder.1} parent=0 // pred_check
    _
  $region7: #{gfno_encoder.1} parent=0 // pred_check_branch
    %13 = sbr.rel (0) target = $region9
  $region8: #{gfno_encoder.1} parent=0 // pred_region
    _
  $region9: #{gfno_encoder.1} parent=0 // pred_fallthru
    _
  // Predicated region
  $region10: #{gfno_encoder.1} parent=0 // pred_check
    _
  $region11: #{gfno_encoder.1} parent=0 // pred_check_branch
    %15 = sbr.rel (0) target = $region13
  $region12: #{gfno_encoder.1} parent=0 // pred_region
    _
  $region13: #{gfno_encoder.1} parent=0 // pred_fallthru
    _
  // Predicated region
  $region14: #{gfno_encoder.1} parent=0 // pred_check
    _
  $region15: #{gfno_encoder.1} parent=0 // pred_check_branch
    %17 = sbr.rel (0) target = $region17
  $region16: #{gfno_encoder.1} parent=0 // pred_region
    _
  $region17: #{gfno_encoder.1} parent=0 // pred_fallthru
    _
  // Predicated region
  $region18: #{gfno_encoder.1} parent=0 // pred_check
    _
  $region19: #{gfno_encoder.1} parent=0 // pred_check_branch
    %19 = sbr.rel (0) target = $region21
  $region20: #{gfno_encoder.1} parent=0 // pred_region
    _
  $region21: #{gfno_encoder.1} parent=0 // pred_fallthru
    _
  %v21 = vld [vmem:[%s0] sm:$0xff]
  %v22 = vld [vmem:[%s0 + $0x8] sm:$0xff]
  %v23 = vld [vmem:[%s0 + $0x10] sm:$0xff]
  %v24 = vld [vmem:[%s0 + $0x18] sm:$0xff]
  %v25 = vld [vmem:[%s4] sm:$0xf]
  %v26 = vld [vmem:[%s4 + $0x4] sm:$0xf]
  %v27 = vld [vmem:[%s4 + $0x8] sm:$0xf]
  %v28 = vld [vmem:[%s4 + $0xc] sm:$0xf]
  %v29 = vld [vmem:[%s4 + $0x10] sm:$0xf]
  %v30 = vld [vmem:[%s4 + $0x14] sm:$0xf]
  %v31 = vld [vmem:[%s4 + $0x18] sm:$0xf]
  %v32 = vld [vmem:[%s4 + $0x1c] sm:$0xf]
  %v33 = vld [vmem:[%s4 + $0x20] sm:$0xf]
  %v34 = vld [vmem:[%s4 + $0x24] sm:$0xf]
  %v35 = vld [vmem:[%s4 + $0x28] sm:$0xf]
  %v36 = vld [vmem:[%s4 + $0x2c] sm:$0xf]
  %v37 = vld [vmem:[%s4 + $0x30] sm:$0xf]
  %v38 = vld [vmem:[%s4 + $0x34] sm:$0xf]
  %v39 = vld [vmem:[%s4 + $0x38] sm:$0xf]
  %v40 = vld [vmem:[%s4 + $0x3c] sm:$0xf]
  %v41 = vld [vmem:[%s4 + $0x40] sm:$0xf]
  %v42 = vld [vmem:[%s4 + $0x44] sm:$0xf]
  %v43 = vld [vmem:[%s4 + $0x48] sm:$0xf]
  %v44 = vld [vmem:[%s4 + $0x4c] sm:$0xf]
  %v45 = vld [vmem:[%s4 + $0x50] sm:$0xf]
  %v46 = vld [vmem:[%s4 + $0x54] sm:$0xf]
  %v47 = vld [vmem:[%s4 + $0x58] sm:$0xf]
  %v48 = vld [vmem:[%s4 + $0x5c] sm:$0xf]
  %v49 = vld [vmem:[%s4 + $0x60] sm:$0xf]
  %v50 = vld [vmem:[%s4 + $0x64] sm:$0xf]
  %v51 = vld [vmem:[%s4 + $0x68] sm:$0xf]
  %v52 = vld [vmem:[%s4 + $0x6c] sm:$0xf]
  %v53 = vld [vmem:[%s4 + $0x70] sm:$0xf]
  %v54 = vld [vmem:[%s4 + $0x74] sm:$0xf]
  %v55 = vld [vmem:[%s4 + $0x78] sm:$0xf]
  %v56 = vld [vmem:[%s4 + $0x7c] sm:$0xf]
  %v61 = vunpack.c.l.b16 %v21
  %v62 = vunpack.c.h.b16 %v21
  %v63 = vunpack.c.l.b16 %v22
  %v64 = vunpack.c.h.b16 %v22
  %v65 = vunpack.c.l.b16 %v23
  %v66 = vunpack.c.h.b16 %v23
  %v67 = vunpack.c.l.b16 %v24
  %v68 = vunpack.c.h.b16 %v24
  %v69 = vpack.c.b16 %v63, %v61
  %v70 = vpack.c.b16 %v64, %v62
  %v71 = vpack.c.b16 %v67, %v65
  %v72 = vpack.c.b16 %v68, %v66
  %v109 = vunpack.c.l.b16 %v25
  %v110 = vunpack.c.l.b16 %v26
  %v111 = vunpack.c.l.b16 %v27
  %v112 = vunpack.c.l.b16 %v28
  %v113 = vunpack.c.l.b16 %v29
  %v114 = vunpack.c.l.b16 %v30
  %v115 = vunpack.c.l.b16 %v31
  %v116 = vunpack.c.l.b16 %v32
  %v117 = vunpack.c.l.b16 %v33
  %v118 = vunpack.c.l.b16 %v34
  %v119 = vunpack.c.l.b16 %v35
  %v120 = vunpack.c.l.b16 %v36
  %v121 = vunpack.c.l.b16 %v37
  %v122 = vunpack.c.l.b16 %v38
  %v123 = vunpack.c.l.b16 %v39
  %v124 = vunpack.c.l.b16 %v40
  %v125 = vunpack.c.l.b16 %v41
  %v126 = vunpack.c.l.b16 %v42
  %v127 = vunpack.c.l.b16 %v43
  %v128 = vunpack.c.l.b16 %v44
  %v129 = vunpack.c.l.b16 %v45
  %v130 = vunpack.c.l.b16 %v46
  %v131 = vunpack.c.l.b16 %v47
  %v132 = vunpack.c.l.b16 %v48
  %v133 = vunpack.c.l.b16 %v49
  %v134 = vunpack.c.l.b16 %v50
  %v135 = vunpack.c.l.b16 %v51
  %v136 = vunpack.c.l.b16 %v52
  %v137 = vunpack.c.l.b16 %v53
  %v138 = vunpack.c.l.b16 %v54
  %v139 = vunpack.c.l.b16 %v55
  %v140 = vunpack.c.l.b16 %v56
  %v141 = vpack.c.b16 %v110, %v109
  %v142 = vpack.c.b16 %v112, %v111
  %v143 = vpack.c.b16 %v114, %v113
  %v144 = vpack.c.b16 %v116, %v115
  %v145 = vpack.c.b16 %v118, %v117
  %v146 = vpack.c.b16 %v120, %v119
  %v147 = vpack.c.b16 %v122, %v121
  %v148 = vpack.c.b16 %v124, %v123
  %v149 = vpack.c.b16 %v126, %v125
  %v150 = vpack.c.b16 %v128, %v127
  %v151 = vpack.c.b16 %v130, %v129
  %v152 = vpack.c.b16 %v132, %v131
  %v153 = vpack.c.b16 %v134, %v133
  %v154 = vpack.c.b16 %v136, %v135
  %v155 = vpack.c.b16 %v138, %v137
  %v156 = vpack.c.b16 %v140, %v139
  %173 = vmatprep.subr.bf16.mxu0 0
  %174 = vmatpush1.bf16.msra.mxu0 %v141
  %175 = vmatprep.subr.bf16.mxu0 0
  %176 = vmatpush1.bf16.msra.mxu0 %v142
  %177 = vmatprep.subr.bf16.mxu0 0
  %178 = vmatpush1.bf16.msra.mxu0 %v143
  %179 = vmatprep.subr.bf16.mxu0 0
  %180 = vmatpush1.bf16.msra.mxu0 %v144
  %181 = vmatprep.subr.bf16.mxu0 0
  %182 = vmatpush1.bf16.msra.mxu0 %v145
  %183 = vmatprep.subr.bf16.mxu0 0
  %184 = vmatpush1.bf16.msra.mxu0 %v146
  %185 = vmatprep.subr.bf16.mxu0 0
  %186 = vmatpush1.bf16.msra.mxu0 %v147
  %187 = vmatprep.subr.bf16.mxu0 0
  %188 = vmatpush1.bf16.msra.mxu0 %v148
  %189 = vmatprep.subr.bf16.mxu0 0
  %190 = vmatpush1.bf16.msra.mxu0 %v149
  %191 = vmatprep.subr.bf16.mxu0 0
  %192 = vmatpush1.bf16.msra.mxu0 %v150
  %193 = vmatprep.subr.bf16.mxu0 0
  %194 = vmatpush1.bf16.msra.mxu0 %v151
  %195 = vmatprep.subr.bf16.mxu0 0
  %196 = vmatpush1.bf16.msra.mxu0 %v152
  %197 = vmatprep.subr.bf16.mxu0 0
  %198 = vmatpush1.bf16.msra.mxu0 %v153
  %199 = vmatprep.subr.bf16.mxu0 0
  %200 = vmatpush1.bf16.msra.mxu0 %v154
  %201 = vmatprep.subr.bf16.mxu0 0
  %202 = vmatpush1.bf16.msra.mxu0 %v155
  %203 = vmatprep.subr.bf16.mxu0 0
  %204 = vmatpush1.bf16.msra.mxu0 %v156
  %205 = vmatprep.mubr.bf16.mxu0 %v70
  %206 = vmatmul.mubr.bf16.gmra.mrb[0].mxu0 %v69
  %v207 = vpop.f32.mrb[0].mxu0
  %v208 = vadd.f32 0.0, %v207
  %v209 = vpop.f32.mrb[0].mxu0
  %v210 = vpop.f32.mrb[0].mxu0
  %v211 = vadd.f32 0.0, %v210
  %v212 = vpop.f32.mrb[0].mxu0
  %213 = vmatprep.mubr.bf16.mxu0 %v72
  %214 = vmatmul.mubr.bf16.gmra.mrb[0].mxu0 %v71
  %v215 = vpop.f32.mrb[0].mxu0
  %v216 = vadd.f32 0.0, %v215
  %v217 = vpop.f32.mrb[0].mxu0
  %v218 = vpop.f32.mrb[0].mxu0
  %v219 = vadd.f32 0.0, %v218
  %v220 = vpop.f32.mrb[0].mxu0
  %221 = vdwg.mxu0
  %v222 = vld [vmem:[%s1] sm:$0xf]
  %v223 = vld [vmem:[%s1 + $0x4] sm:$0xf]
  %v224 = vld [vmem:[%s1 + $0x8] sm:$0xf]
  %v225 = vld [vmem:[%s1 + $0xc] sm:$0xf]
  %v226 = vld [vmem:[%s1 + $0x10] sm:$0xf]
  %v227 = vld [vmem:[%s1 + $0x14] sm:$0xf]
  %v228 = vld [vmem:[%s1 + $0x18] sm:$0xf]
  %v229 = vld [vmem:[%s1 + $0x1c] sm:$0xf]
  %v230 = vld [vmem:[%s1 + $0x20] sm:$0xf]
  %v231 = vld [vmem:[%s1 + $0x24] sm:$0xf]
  %v232 = vld [vmem:[%s1 + $0x28] sm:$0xf]
  %v233 = vld [vmem:[%s1 + $0x2c] sm:$0xf]
  %v234 = vld [vmem:[%s1 + $0x30] sm:$0xf]
  %v235 = vld [vmem:[%s1 + $0x34] sm:$0xf]
  %v236 = vld [vmem:[%s1 + $0x38] sm:$0xf]
  %v237 = vld [vmem:[%s1 + $0x3c] sm:$0xf]
  %v238 = vld [vmem:[%s1 + $0x40] sm:$0xf]
  %v239 = vld [vmem:[%s1 + $0x44] sm:$0xf]
  %v240 = vld [vmem:[%s1 + $0x48] sm:$0xf]
  %v241 = vld [vmem:[%s1 + $0x4c] sm:$0xf]
  %v242 = vld [vmem:[%s1 + $0x50] sm:$0xf]
  %v243 = vld [vmem:[%s1 + $0x54] sm:$0xf]
  %v244 = vld [vmem:[%s1 + $0x58] sm:$0xf]
  %v245 = vld [vmem:[%s1 + $0x5c] sm:$0xf]
  %v246 = vld [vmem:[%s1 + $0x60] sm:$0xf]
  %v247 = vld [vmem:[%s1 + $0x64] sm:$0xf]
  %v248 = vld [vmem:[%s1 + $0x68] sm:$0xf]
  %v249 = vld [vmem:[%s1 + $0x6c] sm:$0xf]
  %v250 = vld [vmem:[%s1 + $0x70] sm:$0xf]
  %v251 = vld [vmem:[%s1 + $0x74] sm:$0xf]
  %v252 = vld [vmem:[%s1 + $0x78] sm:$0xf]
  %v253 = vld [vmem:[%s1 + $0x7c] sm:$0xf]
  %v254 = vpack.c.bf16 %v211, %v208
  %v255 = vpack.c.bf16 %v219, %v216
  %v288 = vunpack.c.l.b16 %v222
  %v289 = vunpack.c.l.b16 %v223
  %v290 = vunpack.c.l.b16 %v224
  %v291 = vunpack.c.l.b16 %v225
  %v292 = vunpack.c.l.b16 %v226
  %v293 = vunpack.c.l.b16 %v227
  %v294 = vunpack.c.l.b16 %v228
  %v295 = vunpack.c.l.b16 %v229
  %v296 = vunpack.c.l.b16 %v230
  %v297 = vunpack.c.l.b16 %v231
  %v298 = vunpack.c.l.b16 %v232
  %v299 = vunpack.c.l.b16 %v233
  %v300 = vunpack.c.l.b16 %v234
  %v301 = vunpack.c.l.b16 %v235
  %v302 = vunpack.c.l.b16 %v236
  %v303 = vunpack.c.l.b16 %v237
  %v304 = vunpack.c.l.b16 %v238
  %v305 = vunpack.c.l.b16 %v239
  %v306 = vunpack.c.l.b16 %v240
  %v307 = vunpack.c.l.b16 %v241
  %v308 = vunpack.c.l.b16 %v242
  %v309 = vunpack.c.l.b16 %v243
  %v310 = vunpack.c.l.b16 %v244
  %v311 = vunpack.c.l.b16 %v245
  %v312 = vunpack.c.l.b16 %v246
  %v313 = vunpack.c.l.b16 %v247
  %v314 = vunpack.c.l.b16 %v248
  %v315 = vunpack.c.l.b16 %v249
  %v316 = vunpack.c.l.b16 %v250
  %v317 = vunpack.c.l.b16 %v251
  %v318 = vunpack.c.l.b16 %v252
  %v319 = vunpack.c.l.b16 %v253
  %v320 = vpack.c.b16 %v289, %v288
  %v321 = vpack.c.b16 %v291, %v290
  %v322 = vpack.c.b16 %v293, %v292
  %v323 = vpack.c.b16 %v295, %v294
  %v324 = vpack.c.b16 %v297, %v296
  %v325 = vpack.c.b16 %v299, %v298
  %v326 = vpack.c.b16 %v301, %v300
  %v327 = vpack.c.b16 %v303, %v302
  %v328 = vpack.c.b16 %v305, %v304
  %v329 = vpack.c.b16 %v307, %v306
  %v330 = vpack.c.b16 %v309, %v308
  %v331 = vpack.c.b16 %v311, %v310
  %v332 = vpack.c.b16 %v313, %v312
  %v333 = vpack.c.b16 %v315, %v314
  %v334 = vpack.c.b16 %v317, %v316
  %v335 = vpack.c.b16 %v319, %v318
  %vm336 = vcmask 261120
  %v338 = vsel %vm336, %v320, 0
  %v341 = vsel %vm336, %v321, 0
  %v344 = vsel %vm336, %v322, 0
  %v347 = vsel %vm336, %v323, 0
  %v350 = vsel %vm336, %v324, 0
  %v353 = vsel %vm336, %v325, 0
  %v356 = vsel %vm336, %v326, 0
  %v359 = vsel %vm336, %v327, 0
  %v362 = vsel %vm336, %v328, 0
  %v365 = vsel %vm336, %v329, 0
  %v368 = vsel %vm336, %v330, 0
  %v371 = vsel %vm336, %v331, 0
  %v374 = vsel %vm336, %v332, 0
  %v377 = vsel %vm336, %v333, 0
  %v380 = vsel %vm336, %v334, 0
  %v383 = vsel %vm336, %v335, 0
  %385 = vmatprep.subr.bf16.mxu0 0
  %386 = vmatpush1.bf16.msra.mxu0 %v254
  %387 = vmatprep.subr.bf16.mxu0 0
  %388 = vmatpush1.bf16.msra.mxu0 %v255
  %389 = vmatprep.subr.bf16.mxu0 0
  %390 = vmatpush1.bf16.msra.mxu0 0
  %391 = vmatprep.subr.bf16.mxu0 0
  %392 = vmatpush1.bf16.msra.mxu0 0
  %393 = vmatprep.subr.bf16.mxu0 0
  %394 = vmatpush1.bf16.msra.mxu0 0
  %395 = vmatprep.subr.bf16.mxu0 0
  %396 = vmatpush1.bf16.msra.mxu0 0
  %397 = vmatprep.subr.bf16.mxu0 0
  %398 = vmatpush1.bf16.msra.mxu0 0
  %399 = vmatprep.subr.bf16.mxu0 0
  %400 = vmatpush1.bf16.msra.mxu0 0
  %401 = vmatprep.subr.bf16.mxu0 0
  %402 = vmatpush1.bf16.msra.mxu0 0
  %403 = vmatprep.subr.bf16.mxu0 0
  %404 = vmatpush1.bf16.msra.mxu0 0
  %405 = vmatprep.subr.bf16.mxu0 0
  %406 = vmatpush1.bf16.msra.mxu0 0
  %407 = vmatprep.subr.bf16.mxu0 0
  %408 = vmatpush1.bf16.msra.mxu0 0
  %409 = vmatprep.subr.bf16.mxu0 0
  %410 = vmatpush1.bf16.msra.mxu0 0
  %411 = vmatprep.subr.bf16.mxu0 0
  %412 = vmatpush1.bf16.msra.mxu0 0
  %413 = vmatprep.subr.bf16.mxu0 0
  %414 = vmatpush1.bf16.msra.mxu0 0
  %415 = vmatprep.subr.bf16.mxu0 0
  %416 = vmatpush1.bf16.msra.mxu0 0
  %417 = vmatprep.mubr.bf16.mxu0 0
  %418 = vmatmul.mubr.bf16.gmra.mrb[0].mxu0 %v338
  %v419 = vpop.f32.mrb[0].mxu0
  %v420 = vadd.f32 0.0, %v419
  %v421 = vpop.f32.mrb[0].mxu0
  %v422 = vpop.f32.mrb[0].mxu0
  %v423 = vadd.f32 0.0, %v422
  %v424 = vpop.f32.mrb[0].mxu0
  %425 = vmatprep.mubr.bf16.mxu0 0
  %426 = vmatmul.mubr.bf16.gmra.mrb[0].mxu0 %v341
  %v427 = vpop.f32.mrb[0].mxu0
  %v428 = vadd.f32 0.0, %v427
  %v429 = vpop.f32.mrb[0].mxu0
  %v430 = vpop.f32.mrb[0].mxu0
  %v431 = vadd.f32 0.0, %v430
  %v432 = vpop.f32.mrb[0].mxu0
  %433 = vmatprep.mubr.bf16.mxu0 0
  %434 = vmatmul.mubr.bf16.gmra.mrb[0].mxu0 %v344
  %v435 = vpop.f32.mrb[0].mxu0
  %v436 = vadd.f32 0.0, %v435
  %v437 = vpop.f32.mrb[0].mxu0
  %v438 = vpop.f32.mrb[0].mxu0
  %v439 = vadd.f32 0.0, %v438
  %v440 = vpop.f32.mrb[0].mxu0
  %441 = vmatprep.mubr.bf16.mxu0 0
  %442 = vmatmul.mubr.bf16.gmra.mrb[0].mxu0 %v347
  %v443 = vpop.f32.mrb[0].mxu0
  %v444 = vadd.f32 0.0, %v443
  %v445 = vpop.f32.mrb[0].mxu0
  %v446 = vpop.f32.mrb[0].mxu0
  %v447 = vadd.f32 0.0, %v446
  %v448 = vpop.f32.mrb[0].mxu0
  %449 = vmatprep.mubr.bf16.mxu0 0
  %450 = vmatmul.mubr.bf16.gmra.mrb[0].mxu0 %v350
  %v451 = vpop.f32.mrb[0].mxu0
  %v452 = vadd.f32 0.0, %v451
  %v453 = vpop.f32.mrb[0].mxu0
  %v454 = vpop.f32.mrb[0].mxu0
  %v455 = vadd.f32 0.0, %v454
  %v456 = vpop.f32.mrb[0].mxu0
  %457 = vmatprep.mubr.bf16.mxu0 0
  %458 = vmatmul.mubr.bf16.gmra.mrb[0].mxu0 %v353
  %v459 = vpop.f32.mrb[0].mxu0
  %v460 = vadd.f32 0.0, %v459
  %v461 = vpop.f32.mrb[0].mxu0
  %v462 = vpop.f32.mrb[0].mxu0
  %v463 = vadd.f32 0.0, %v462
  %v464 = vpop.f32.mrb[0].mxu0
  %465 = vmatprep.mubr.bf16.mxu0 0
  %466 = vmatmul.mubr.bf16.gmra.mrb[0].mxu0 %v356
  %v467 = vpop.f32.mrb[0].mxu0
  %v468 = vadd.f32 0.0, %v467
  %v469 = vpop.f32.mrb[0].mxu0
  %v470 = vpop.f32.mrb[0].mxu0
  %v471 = vadd.f32 0.0, %v470
  %v472 = vpop.f32.mrb[0].mxu0
  %473 = vmatprep.mubr.bf16.mxu0 0
  %474 = vmatmul.mubr.bf16.gmra.mrb[0].mxu0 %v359
  %v475 = vpop.f32.mrb[0].mxu0
  %v476 = vadd.f32 0.0, %v475
  %v477 = vpop.f32.mrb[0].mxu0
  %v478 = vpop.f32.mrb[0].mxu0
  %v479 = vadd.f32 0.0, %v478
  %v480 = vpop.f32.mrb[0].mxu0
  %481 = vmatprep.mubr.bf16.mxu0 0
  %482 = vmatmul.mubr.bf16.gmra.mrb[0].mxu0 %v362
  %v483 = vpop.f32.mrb[0].mxu0
  %v484 = vadd.f32 0.0, %v483
  %v485 = vpop.f32.mrb[0].mxu0
  %v486 = vpop.f32.mrb[0].mxu0
  %v487 = vadd.f32 0.0, %v486
  %v488 = vpop.f32.mrb[0].mxu0
  %489 = vmatprep.mubr.bf16.mxu0 0
  %490 = vmatmul.mubr.bf16.gmra.mrb[0].mxu0 %v365
  %v491 = vpop.f32.mrb[0].mxu0
  %v492 = vadd.f32 0.0, %v491
  %v493 = vpop.f32.mrb[0].mxu0
  %v494 = vpop.f32.mrb[0].mxu0
  %v495 = vadd.f32 0.0, %v494
  %v496 = vpop.f32.mrb[0].mxu0
  %497 = vmatprep.mubr.bf16.mxu0 0
  %498 = vmatmul.mubr.bf16.gmra.mrb[0].mxu0 %v368
  %v499 = vpop.f32.mrb[0].mxu0
  %v500 = vadd.f32 0.0, %v499
  %v501 = vpop.f32.mrb[0].mxu0
  %v502 = vpop.f32.mrb[0].mxu0
  %v503 = vadd.f32 0.0, %v502
  %v504 = vpop.f32.mrb[0].mxu0
  %505 = vmatprep.mubr.bf16.mxu0 0
  %506 = vmatmul.mubr.bf16.gmra.mrb[0].mxu0 %v371
  %v507 = vpop.f32.mrb[0].mxu0
  %v508 = vadd.f32 0.0, %v507
  %v509 = vpop.f32.mrb[0].mxu0
  %v510 = vpop.f32.mrb[0].mxu0
  %v511 = vadd.f32 0.0, %v510
  %v512 = vpop.f32.mrb[0].mxu0
  %513 = vmatprep.mubr.bf16.mxu0 0
  %514 = vmatmul.mubr.bf16.gmra.mrb[0].mxu0 %v374
  %v515 = vpop.f32.mrb[0].mxu0
  %v516 = vadd.f32 0.0, %v515
  %v517 = vpop.f32.mrb[0].mxu0
  %v518 = vpop.f32.mrb[0].mxu0
  %v519 = vadd.f32 0.0, %v518
  %v520 = vpop.f32.mrb[0].mxu0
  %521 = vmatprep.mubr.bf16.mxu0 0
  %522 = vmatmul.mubr.bf16.gmra.mrb[0].mxu0 %v377
  %v523 = vpop.f32.mrb[0].mxu0
  %v524 = vadd.f32 0.0, %v523
  %v525 = vpop.f32.mrb[0].mxu0
  %v526 = vpop.f32.mrb[0].mxu0
  %v527 = vadd.f32 0.0, %v526
  %v528 = vpop.f32.mrb[0].mxu0
  %529 = vmatprep.mubr.bf16.mxu0 0
  %530 = vmatmul.mubr.bf16.gmra.mrb[0].mxu0 %v380
  %v531 = vpop.f32.mrb[0].mxu0
  %v532 = vadd.f32 0.0, %v531
  %v533 = vpop.f32.mrb[0].mxu0
  %v534 = vpop.f32.mrb[0].mxu0
  %v535 = vadd.f32 0.0, %v534
  %v536 = vpop.f32.mrb[0].mxu0
  %537 = vmatprep.mubr.bf16.mxu0 0
  %538 = vmatmul.mubr.bf16.gmra.mrb[0].mxu0 %v383
  %v539 = vpop.f32.mrb[0].mxu0
  %v540 = vadd.f32 0.0, %v539
  %v541 = vpop.f32.mrb[0].mxu0
  %v542 = vpop.f32.mrb[0].mxu0
  %v543 = vadd.f32 0.0, %v542
  %v544 = vpop.f32.mrb[0].mxu0
  %545 = vdwg.mxu0
  %v546 = vmax.f32 %v420, 0.0
  %v547 = vmax.f32 %v423, 0.0
  %v548 = vmax.f32 %v428, 0.0
  %v549 = vmax.f32 %v431, 0.0
  %v550 = vmax.f32 %v436, 0.0
  %v551 = vmax.f32 %v439, 0.0
  %v552 = vmax.f32 %v444, 0.0
  %v553 = vmax.f32 %v447, 0.0
  %v554 = vmax.f32 %v452, 0.0
  %v555 = vmax.f32 %v455, 0.0
  %v556 = vmax.f32 %v460, 0.0
  %v557 = vmax.f32 %v463, 0.0
  %v558 = vmax.f32 %v468, 0.0
  %v559 = vmax.f32 %v471, 0.0
  %v560 = vmax.f32 %v476, 0.0
  %v561 = vmax.f32 %v479, 0.0
  %v562 = vmax.f32 %v484, 0.0
  %v563 = vmax.f32 %v487, 0.0
  %v564 = vmax.f32 %v492, 0.0
  %v565 = vmax.f32 %v495, 0.0
  %v566 = vmax.f32 %v500, 0.0
  %v567 = vmax.f32 %v503, 0.0
  %v568 = vmax.f32 %v508, 0.0
  %v569 = vmax.f32 %v511, 0.0
  %v570 = vmax.f32 %v516, 0.0
  %v571 = vmax.f32 %v519, 0.0
  %v572 = vmax.f32 %v524, 0.0
  %v573 = vmax.f32 %v527, 0.0
  %v574 = vmax.f32 %v532, 0.0
  %v575 = vmax.f32 %v535, 0.0
  %v576 = vmax.f32 %v540, 0.0
  %v577 = vmax.f32 %v543, 0.0
  %v578 = vld [vmem:[%s2] sm:$0xff]
  %v579 = vld [vmem:[%s2 + $0x8] sm:$0xff]
  %v580 = vld [vmem:[%s2 + $0x10] sm:$0xff]
  %v581 = vld [vmem:[%s2 + $0x18] sm:$0xff]
  %v582 = vld [vmem:[%s2 + $0x20] sm:$0xff]
  %v583 = vld [vmem:[%s2 + $0x28] sm:$0xff]
  %v584 = vld [vmem:[%s2 + $0x30] sm:$0xff]
  %v585 = vld [vmem:[%s2 + $0x38] sm:$0xff]
  %v586 = vld [vmem:[%s2 + $0x40] sm:$0xff]
  %v587 = vld [vmem:[%s2 + $0x48] sm:$0xff]
  %v588 = vld [vmem:[%s2 + $0x50] sm:$0xff]
  %v589 = vld [vmem:[%s2 + $0x58] sm:$0xff]
  %v590 = vld [vmem:[%s2 + $0x60] sm:$0xff]
  %v591 = vld [vmem:[%s2 + $0x68] sm:$0xff]
  %v592 = vld [vmem:[%s2 + $0x70] sm:$0xff]
  %v593 = vld [vmem:[%s2 + $0x78] sm:$0xff]
  %v594 = vld [vmem:[%s2 + $0x80] sm:$0xff]
  %v595 = vld [vmem:[%s2 + $0x88] sm:$0xff]
  %v596 = vld [vmem:[%s2 + $0x90] sm:$0xff]
  %v597 = vld [vmem:[%s2 + $0x98] sm:$0xff]
  %v598 = vld [vmem:[%s2 + $0xa0] sm:$0xff]
  %v599 = vld [vmem:[%s2 + $0xa8] sm:$0xff]
  %v600 = vld [vmem:[%s2 + $0xb0] sm:$0xff]
  %v601 = vld [vmem:[%s2 + $0xb8] sm:$0xff]
  %v602 = vld [vmem:[%s2 + $0xc0] sm:$0xff]
  %v603 = vld [vmem:[%s2 + $0xc8] sm:$0xff]
  %v604 = vld [vmem:[%s2 + $0xd0] sm:$0xff]
  %v605 = vld [vmem:[%s2 + $0xd8] sm:$0xff]
  %v606 = vld [vmem:[%s2 + $0xe0] sm:$0xff]
  %v607 = vld [vmem:[%s2 + $0xe8] sm:$0xff]
  %v608 = vld [vmem:[%s2 + $0xf0] sm:$0xff]
  %v609 = vld [vmem:[%s2 + $0xf8] sm:$0xff]
  %v610 = vpack.c.bf16 %v547, %v546
  %v611 = vpack.c.bf16 %v549, %v548
  %v612 = vpack.c.bf16 %v551, %v550
  %v613 = vpack.c.bf16 %v553, %v552
  %v614 = vpack.c.bf16 %v555, %v554
  %v615 = vpack.c.bf16 %v557, %v556
  %v616 = vpack.c.bf16 %v559, %v558
  %v617 = vpack.c.bf16 %v561, %v560
  %v618 = vpack.c.bf16 %v563, %v562
  %v619 = vpack.c.bf16 %v565, %v564
  %v620 = vpack.c.bf16 %v567, %v566
  %v621 = vpack.c.bf16 %v569, %v568
  %v622 = vpack.c.bf16 %v571, %v570
  %v623 = vpack.c.bf16 %v573, %v572
  %v624 = vpack.c.bf16 %v575, %v574
  %v625 = vpack.c.bf16 %v577, %v576
  %v658 = vunpack.c.l.b16 %v578
  %v659 = vunpack.c.h.b16 %v578
  %v660 = vunpack.c.l.b16 %v579
  %v661 = vunpack.c.h.b16 %v579
  %v662 = vunpack.c.l.b16 %v580
  %v663 = vunpack.c.h.b16 %v580
  %v664 = vunpack.c.l.b16 %v581
  %v665 = vunpack.c.h.b16 %v581
  %v666 = vunpack.c.l.b16 %v582
  %v667 = vunpack.c.h.b16 %v582
  %v668 = vunpack.c.l.b16 %v583
  %v669 = vunpack.c.h.b16 %v583
  %v670 = vunpack.c.l.b16 %v584
  %v671 = vunpack.c.h.b16 %v584
  %v672 = vunpack.c.l.b16 %v585
  %v673 = vunpack.c.h.b16 %v585
  %v674 = vunpack.c.l.b16 %v586
  %v675 = vunpack.c.h.b16 %v586
  %v676 = vunpack.c.l.b16 %v587
  %v677 = vunpack.c.h.b16 %v587
  %v678 = vunpack.c.l.b16 %v588
  %v679 = vunpack.c.h.b16 %v588
  %v680 = vunpack.c.l.b16 %v589
  %v681 = vunpack.c.h.b16 %v589
  %v682 = vunpack.c.l.b16 %v590
  %v683 = vunpack.c.h.b16 %v590
  %v684 = vunpack.c.l.b16 %v591
  %v685 = vunpack.c.h.b16 %v591
  %v686 = vunpack.c.l.b16 %v592
  %v687 = vunpack.c.h.b16 %v592
  %v688 = vunpack.c.l.b16 %v593
  %v689 = vunpack.c.h.b16 %v593
  %v690 = vunpack.c.l.b16 %v594
  %v691 = vunpack.c.h.b16 %v594
  %v692 = vunpack.c.l.b16 %v595
  %v693 = vunpack.c.h.b16 %v595
  %v694 = vunpack.c.l.b16 %v596
  %v695 = vunpack.c.h.b16 %v596
  %v696 = vunpack.c.l.b16 %v597
  %v697 = vunpack.c.h.b16 %v597
  %v698 = vunpack.c.l.b16 %v598
  %v699 = vunpack.c.h.b16 %v598
  %v700 = vunpack.c.l.b16 %v599
  %v701 = vunpack.c.h.b16 %v599
  %v702 = vunpack.c.l.b16 %v600
  %v703 = vunpack.c.h.b16 %v600
  %v704 = vunpack.c.l.b16 %v601
  %v705 = vunpack.c.h.b16 %v601
  %v706 = vunpack.c.l.b16 %v602
  %v707 = vunpack.c.h.b16 %v602
  %v708 = vunpack.c.l.b16 %v603
  %v709 = vunpack.c.h.b16 %v603
  %v710 = vunpack.c.l.b16 %v604
  %v711 = vunpack.c.h.b16 %v604
  %v712 = vunpack.c.l.b16 %v605
  %v713 = vunpack.c.h.b16 %v605
  %v714 = vunpack.c.l.b16 %v606
  %v715 = vunpack.c.h.b16 %v606
  %v716 = vunpack.c.l.b16 %v607
  %v717 = vunpack.c.h.b16 %v607
  %v718 = vunpack.c.l.b16 %v608
  %v719 = vunpack.c.h.b16 %v608
  %v720 = vunpack.c.l.b16 %v609
  %v721 = vunpack.c.h.b16 %v609
  %v722 = vpack.c.b16 %v660, %v658
  %v723 = vpack.c.b16 %v661, %v659
  %v724 = vpack.c.b16 %v664, %v662
  %v725 = vpack.c.b16 %v665, %v663
  %v726 = vpack.c.b16 %v668, %v666
  %v727 = vpack.c.b16 %v669, %v667
  %v728 = vpack.c.b16 %v672, %v670
  %v729 = vpack.c.b16 %v673, %v671
  %v730 = vpack.c.b16 %v676, %v674
  %v731 = vpack.c.b16 %v677, %v675
  %v732 = vpack.c.b16 %v680, %v678
  %v733 = vpack.c.b16 %v681, %v679
  %v734 = vpack.c.b16 %v684, %v682
  %v735 = vpack.c.b16 %v685, %v683
  %v736 = vpack.c.b16 %v688, %v686
  %v737 = vpack.c.b16 %v689, %v687
  %v738 = vpack.c.b16 %v692, %v690
  %v739 = vpack.c.b16 %v693, %v691
  %v740 = vpack.c.b16 %v696, %v694
  %v741 = vpack.c.b16 %v697, %v695
  %v742 = vpack.c.b16 %v700, %v698
  %v743 = vpack.c.b16 %v701, %v699
  %v744 = vpack.c.b16 %v704, %v702
  %v745 = vpack.c.b16 %v705, %v703
  %v746 = vpack.c.b16 %v708, %v706
  %v747 = vpack.c.b16 %v709, %v707
  %v748 = vpack.c.b16 %v712, %v710
  %v749 = vpack.c.b16 %v713, %v711
  %v750 = vpack.c.b16 %v716, %v714
  %v751 = vpack.c.b16 %v717, %v715
  %v752 = vpack.c.b16 %v720, %v718
  %v753 = vpack.c.b16 %v721, %v719
  %786 = vmatprep.subr.bf16.mxu0 0
  %787 = vmatpush1.bf16.msra.mxu0 %v610
  %788 = vmatprep.subr.bf16.mxu0 0
  %789 = vmatpush1.bf16.msra.mxu0 %v611
  %790 = vmatprep.subr.bf16.mxu0 0
  %791 = vmatpush1.bf16.msra.mxu0 %v612
  %792 = vmatprep.subr.bf16.mxu0 0
  %793 = vmatpush1.bf16.msra.mxu0 %v613
  %794 = vmatprep.subr.bf16.mxu0 0
  %795 = vmatpush1.bf16.msra.mxu0 %v614
  %796 = vmatprep.subr.bf16.mxu0 0
  %797 = vmatpush1.bf16.msra.mxu0 %v615
  %798 = vmatprep.subr.bf16.mxu0 0
  %799 = vmatpush1.bf16.msra.mxu0 %v616
  %800 = vmatprep.subr.bf16.mxu0 0
  %801 = vmatpush1.bf16.msra.mxu0 %v617
  %802 = vmatprep.subr.bf16.mxu0 0
  %803 = vmatpush1.bf16.msra.mxu0 %v618
  %804 = vmatprep.subr.bf16.mxu0 0
  %805 = vmatpush1.bf16.msra.mxu0 %v619
  %806 = vmatprep.subr.bf16.mxu0 0
  %807 = vmatpush1.bf16.msra.mxu0 %v620
  %808 = vmatprep.subr.bf16.mxu0 0
  %809 = vmatpush1.bf16.msra.mxu0 %v621
  %810 = vmatprep.subr.bf16.mxu0 0
  %811 = vmatpush1.bf16.msra.mxu0 %v622
  %812 = vmatprep.subr.bf16.mxu0 0
  %813 = vmatpush1.bf16.msra.mxu0 %v623
  %814 = vmatprep.subr.bf16.mxu0 0
  %815 = vmatpush1.bf16.msra.mxu0 %v624
  %816 = vmatprep.subr.bf16.mxu0 0
  %817 = vmatpush1.bf16.msra.mxu0 %v625
  %818 = vmatprep.mubr.bf16.mxu0 %v723
  %819 = vmatmul.mubr.bf16.gmra.mrb[0].mxu0 %v722
  %v820 = vpop.f32.mrb[0].mxu0
  %v821 = vadd.f32 0.0, %v820
  %v822 = vpop.f32.mrb[0].mxu0
  %v823 = vpop.f32.mrb[0].mxu0
  %v824 = vadd.f32 0.0, %v823
  %v825 = vpop.f32.mrb[0].mxu0
  %826 = vmatprep.mubr.bf16.mxu0 %v725
  %827 = vmatmul.mubr.bf16.gmra.mrb[0].mxu0 %v724
  %v828 = vpop.f32.mrb[0].mxu0
  %v829 = vadd.f32 0.0, %v828
  %v830 = vpop.f32.mrb[0].mxu0
  %v831 = vpop.f32.mrb[0].mxu0
  %v832 = vadd.f32 0.0, %v831
  %v833 = vpop.f32.mrb[0].mxu0
  %834 = vmatprep.mubr.bf16.mxu0 %v727
  %835 = vmatmul.mubr.bf16.gmra.mrb[0].mxu0 %v726
  %v836 = vpop.f32.mrb[0].mxu0
  %v837 = vadd.f32 0.0, %v836
  %v838 = vpop.f32.mrb[0].mxu0
  %v839 = vpop.f32.mrb[0].mxu0
  %v840 = vadd.f32 0.0, %v839
  %v841 = vpop.f32.mrb[0].mxu0
  %842 = vmatprep.mubr.bf16.mxu0 %v729
  %843 = vmatmul.mubr.bf16.gmra.mrb[0].mxu0 %v728
  %v844 = vpop.f32.mrb[0].mxu0
  %v845 = vadd.f32 0.0, %v844
  %v846 = vpop.f32.mrb[0].mxu0
  %v847 = vpop.f32.mrb[0].mxu0
  %v848 = vadd.f32 0.0, %v847
  %v849 = vpop.f32.mrb[0].mxu0
  %850 = vmatprep.mubr.bf16.mxu0 %v731
  %851 = vmatmul.mubr.bf16.gmra.mrb[0].mxu0 %v730
  %v852 = vpop.f32.mrb[0].mxu0
  %v853 = vadd.f32 0.0, %v852
  %v854 = vpop.f32.mrb[0].mxu0
  %v855 = vpop.f32.mrb[0].mxu0
  %v856 = vadd.f32 0.0, %v855
  %v857 = vpop.f32.mrb[0].mxu0
  %858 = vmatprep.mubr.bf16.mxu0 %v733
  %859 = vmatmul.mubr.bf16.gmra.mrb[0].mxu0 %v732
  %v860 = vpop.f32.mrb[0].mxu0
  %v861 = vadd.f32 0.0, %v860
  %v862 = vpop.f32.mrb[0].mxu0
  %v863 = vpop.f32.mrb[0].mxu0
  %v864 = vadd.f32 0.0, %v863
  %v865 = vpop.f32.mrb[0].mxu0
  %866 = vmatprep.mubr.bf16.mxu0 %v735
  %867 = vmatmul.mubr.bf16.gmra.mrb[0].mxu0 %v734
  %v868 = vpop.f32.mrb[0].mxu0
  %v869 = vadd.f32 0.0, %v868
  %v870 = vpop.f32.mrb[0].mxu0
  %v871 = vpop.f32.mrb[0].mxu0
  %v872 = vadd.f32 0.0, %v871
  %v873 = vpop.f32.mrb[0].mxu0
  %874 = vmatprep.mubr.bf16.mxu0 %v737
  %875 = vmatmul.mubr.bf16.gmra.mrb[0].mxu0 %v736
  %v876 = vpop.f32.mrb[0].mxu0
  %v877 = vadd.f32 0.0, %v876
  %v878 = vpop.f32.mrb[0].mxu0
  %v879 = vpop.f32.mrb[0].mxu0
  %v880 = vadd.f32 0.0, %v879
  %v881 = vpop.f32.mrb[0].mxu0
  %882 = vmatprep.mubr.bf16.mxu0 %v739
  %883 = vmatmul.mubr.bf16.gmra.mrb[0].mxu0 %v738
  %v884 = vpop.f32.mrb[0].mxu0
  %v885 = vadd.f32 0.0, %v884
  %v886 = vpop.f32.mrb[0].mxu0
  %v887 = vpop.f32.mrb[0].mxu0
  %v888 = vadd.f32 0.0, %v887
  %v889 = vpop.f32.mrb[0].mxu0
  %890 = vmatprep.mubr.bf16.mxu0 %v741
  %891 = vmatmul.mubr.bf16.gmra.mrb[0].mxu0 %v740
  %v892 = vpop.f32.mrb[0].mxu0
  %v893 = vadd.f32 0.0, %v892
  %v894 = vpop.f32.mrb[0].mxu0
  %v895 = vpop.f32.mrb[0].mxu0
  %v896 = vadd.f32 0.0, %v895
  %v897 = vpop.f32.mrb[0].mxu0
  %898 = vmatprep.mubr.bf16.mxu0 %v743
  %899 = vmatmul.mubr.bf16.gmra.mrb[0].mxu0 %v742
  %v900 = vpop.f32.mrb[0].mxu0
  %v901 = vadd.f32 0.0, %v900
  %v902 = vpop.f32.mrb[0].mxu0
  %v903 = vpop.f32.mrb[0].mxu0
  %v904 = vadd.f32 0.0, %v903
  %v905 = vpop.f32.mrb[0].mxu0
  %906 = vmatprep.mubr.bf16.mxu0 %v745
  %907 = vmatmul.mubr.bf16.gmra.mrb[0].mxu0 %v744
  %v908 = vpop.f32.mrb[0].mxu0
  %v909 = vadd.f32 0.0, %v908
  %v910 = vpop.f32.mrb[0].mxu0
  %v911 = vpop.f32.mrb[0].mxu0
  %v912 = vadd.f32 0.0, %v911
  %v913 = vpop.f32.mrb[0].mxu0
  %914 = vmatprep.mubr.bf16.mxu0 %v747
  %915 = vmatmul.mubr.bf16.gmra.mrb[0].mxu0 %v746
  %v916 = vpop.f32.mrb[0].mxu0
  %v917 = vadd.f32 0.0, %v916
  %v918 = vpop.f32.mrb[0].mxu0
  %v919 = vpop.f32.mrb[0].mxu0
  %v920 = vadd.f32 0.0, %v919
  %v921 = vpop.f32.mrb[0].mxu0
  %922 = vmatprep.mubr.bf16.mxu0 %v749
  %923 = vmatmul.mubr.bf16.gmra.mrb[0].mxu0 %v748
  %v924 = vpop.f32.mrb[0].mxu0
  %v925 = vadd.f32 0.0, %v924
  %v926 = vpop.f32.mrb[0].mxu0
  %v927 = vpop.f32.mrb[0].mxu0
  %v928 = vadd.f32 0.0, %v927
  %v929 = vpop.f32.mrb[0].mxu0
  %930 = vmatprep.mubr.bf16.mxu0 %v751
  %931 = vmatmul.mubr.bf16.gmra.mrb[0].mxu0 %v750
  %v932 = vpop.f32.mrb[0].mxu0
  %v933 = vadd.f32 0.0, %v932
  %v934 = vpop.f32.mrb[0].mxu0
  %v935 = vpop.f32.mrb[0].mxu0
  %v936 = vadd.f32 0.0, %v935
  %v937 = vpop.f32.mrb[0].mxu0
  %938 = vmatprep.mubr.bf16.mxu0 %v753
  %939 = vmatmul.mubr.bf16.gmra.mrb[0].mxu0 %v752
  %v940 = vpop.f32.mrb[0].mxu0
  %v941 = vadd.f32 0.0, %v940
  %v942 = vpop.f32.mrb[0].mxu0
  %v943 = vpop.f32.mrb[0].mxu0
  %v944 = vadd.f32 0.0, %v943
  %v945 = vpop.f32.mrb[0].mxu0
  %946 = vdwg.mxu0
  %v979 = vcombine.low %v821, %v837
  %v980 = vcombine.high %v821, %v837
  %v981 = vcombine.low %v853, %v869
  %v982 = vcombine.high %v853, %v869
  %v983 = vcombine.low %v885, %v901
  %v984 = vcombine.high %v885, %v901
  %v985 = vcombine.low %v917, %v933
  %v986 = vcombine.high %v917, %v933
  %v988 = vunpack.c.l.s4 1966171168
  %v989 = vunpack.c.0.s8 %v988
  %v990 = vlaneseq
  %v991 = vshrl.u32 %v990, 7
  %v992 = vsub.s32 %v989, %v991
  %v993 = vrot.slane %v979, %v992
  %v995 = vunpack.c.l.s4 1966171168
  %v996 = vunpack.c.0.s8 %v995
  %v997 = vlaneseq
  %v998 = vshrl.u32 %v997, 7
  %v999 = vsub.s32 %v996, %v998
  %v1000 = vrot.slane %v980, %v999
  %v1002 = vunpack.c.l.s4 1966171168
  %v1003 = vunpack.c.0.s8 %v1002
  %v1004 = vlaneseq
  %v1005 = vshrl.u32 %v1004, 7
  %v1006 = vsub.s32 %v1003, %v1005
  %v1007 = vrot.slane %v981, %v1006
  %v1009 = vunpack.c.l.s4 1966171168
  %v1010 = vunpack.c.0.s8 %v1009
  %v1011 = vlaneseq
  %v1012 = vshrl.u32 %v1011, 7
  %v1013 = vsub.s32 %v1010, %v1012
  %v1014 = vrot.slane %v982, %v1013
  %v1016 = vunpack.c.l.s4 1966171168
  %v1017 = vunpack.c.0.s8 %v1016
  %v1018 = vlaneseq
  %v1019 = vshrl.u32 %v1018, 7
  %v1020 = vsub.s32 %v1017, %v1019
  %v1021 = vrot.slane %v983, %v1020
  %v1023 = vunpack.c.l.s4 1966171168
  %v1024 = vunpack.c.0.s8 %v1023
  %v1025 = vlaneseq
  %v1026 = vshrl.u32 %v1025, 7
  %v1027 = vsub.s32 %v1024, %v1026
  %v1028 = vrot.slane %v984, %v1027
  %v1030 = vunpack.c.l.s4 1966171168
  %v1031 = vunpack.c.0.s8 %v1030
  %v1032 = vlaneseq
  %v1033 = vshrl.u32 %v1032, 7
  %v1034 = vsub.s32 %v1031, %v1033
  %v1035 = vrot.slane %v985, %v1034
  %v1037 = vunpack.c.l.s4 1966171168
  %v1038 = vunpack.c.0.s8 %v1037
  %v1039 = vlaneseq
  %v1040 = vshrl.u32 %v1039, 7
  %v1041 = vsub.s32 %v1038, %v1040
  %v1042 = vrot.slane %v986, %v1041
  %v1043 = vcombine.low %v993, %v1007
  %v1044 = vcombine.high %v993, %v1007
  %v1045 = vcombine.low %v1000, %v1014
  %v1046 = vcombine.high %v1000, %v1014
  %v1047 = vcombine.low %v1021, %v1035
  %v1048 = vcombine.high %v1021, %v1035
  %v1049 = vcombine.low %v1028, %v1042
  %v1050 = vcombine.high %v1028, %v1042
  %v1052 = vunpack.c.l.s4 1966171168
  %v1053 = vunpack.c.0.s8 %v1052
  %v1054 = vlaneseq
  %v1055 = vshrl.u32 %v1054, 7
  %v1056 = vsub.s32 %v1053, %v1055
  %v1057 = vrot.slane %v1043, %v1056
  %v1059 = vunpack.c.l.s4 1966171168
  %v1060 = vunpack.c.0.s8 %v1059
  %v1061 = vlaneseq
  %v1062 = vshrl.u32 %v1061, 7
  %v1063 = vsub.s32 %v1060, %v1062
  %v1064 = vrot.slane %v1045, %v1063
  %v1066 = vunpack.c.l.s4 1966171168
  %v1067 = vunpack.c.0.s8 %v1066
  %v1068 = vlaneseq
  %v1069 = vshrl.u32 %v1068, 7
  %v1070 = vsub.s32 %v1067, %v1069
  %v1071 = vrot.slane %v1044, %v1070
  %v1073 = vunpack.c.l.s4 1966171168
  %v1074 = vunpack.c.0.s8 %v1073
  %v1075 = vlaneseq
  %v1076 = vshrl.u32 %v1075, 7
  %v1077 = vsub.s32 %v1074, %v1076
  %v1078 = vrot.slane %v1046, %v1077
  %v1080 = vunpack.c.l.s4 1966171168
  %v1081 = vunpack.c.0.s8 %v1080
  %v1082 = vlaneseq
  %v1083 = vshrl.u32 %v1082, 7
  %v1084 = vsub.s32 %v1081, %v1083
  %v1085 = vrot.slane %v1047, %v1084
  %v1087 = vunpack.c.l.s4 1966171168
  %v1088 = vunpack.c.0.s8 %v1087
  %v1089 = vlaneseq
  %v1090 = vshrl.u32 %v1089, 7
  %v1091 = vsub.s32 %v1088, %v1090
  %v1092 = vrot.slane %v1049, %v1091
  %v1094 = vunpack.c.l.s4 1966171168
  %v1095 = vunpack.c.0.s8 %v1094
  %v1096 = vlaneseq
  %v1097 = vshrl.u32 %v1096, 7
  %v1098 = vsub.s32 %v1095, %v1097
  %v1099 = vrot.slane %v1048, %v1098
  %v1101 = vunpack.c.l.s4 1966171168
  %v1102 = vunpack.c.0.s8 %v1101
  %v1103 = vlaneseq
  %v1104 = vshrl.u32 %v1103, 7
  %v1105 = vsub.s32 %v1102, %v1104
  %v1106 = vrot.slane %v1050, %v1105
  %v1107 = vcombine.low %v1057, %v1085
  %v1108 = vcombine.high %v1057, %v1085
  %v1109 = vcombine.low %v1064, %v1092
  %v1110 = vcombine.high %v1064, %v1092
  %v1111 = vcombine.low %v1071, %v1099
  %v1112 = vcombine.high %v1071, %v1099
  %v1113 = vcombine.low %v1078, %v1106
  %v1114 = vcombine.high %v1078, %v1106
  %v1115 = vcombine.low %v824, %v840
  %v1116 = vcombine.high %v824, %v840
  %v1117 = vcombine.low %v856, %v872
  %v1118 = vcombine.high %v856, %v872
  %v1119 = vcombine.low %v888, %v904
  %v1120 = vcombine.high %v888, %v904
  %v1121 = vcombine.low %v920, %v936
  %v1122 = vcombine.high %v920, %v936
  %v1124 = vunpack.c.l.s4 1966171168
  %v1125 = vunpack.c.0.s8 %v1124
  %v1126 = vlaneseq
  %v1127 = vshrl.u32 %v1126, 7
  %v1128 = vsub.s32 %v1125, %v1127
  %v1129 = vrot.slane %v1115, %v1128
  %v1131 = vunpack.c.l.s4 1966171168
  %v1132 = vunpack.c.0.s8 %v1131
  %v1133 = vlaneseq
  %v1134 = vshrl.u32 %v1133, 7
  %v1135 = vsub.s32 %v1132, %v1134
  %v1136 = vrot.slane %v1116, %v1135
  %v1138 = vunpack.c.l.s4 1966171168
  %v1139 = vunpack.c.0.s8 %v1138
  %v1140 = vlaneseq
  %v1141 = vshrl.u32 %v1140, 7
  %v1142 = vsub.s32 %v1139, %v1141
  %v1143 = vrot.slane %v1117, %v1142
  %v1145 = vunpack.c.l.s4 1966171168
  %v1146 = vunpack.c.0.s8 %v1145
  %v1147 = vlaneseq
  %v1148 = vshrl.u32 %v1147, 7
  %v1149 = vsub.s32 %v1146, %v1148
  %v1150 = vrot.slane %v1118, %v1149
  %v1152 = vunpack.c.l.s4 1966171168
  %v1153 = vunpack.c.0.s8 %v1152
  %v1154 = vlaneseq
  %v1155 = vshrl.u32 %v1154, 7
  %v1156 = vsub.s32 %v1153, %v1155
  %v1157 = vrot.slane %v1119, %v1156
  %v1159 = vunpack.c.l.s4 1966171168
  %v1160 = vunpack.c.0.s8 %v1159
  %v1161 = vlaneseq
  %v1162 = vshrl.u32 %v1161, 7
  %v1163 = vsub.s32 %v1160, %v1162
  %v1164 = vrot.slane %v1120, %v1163
  %v1166 = vunpack.c.l.s4 1966171168
  %v1167 = vunpack.c.0.s8 %v1166
  %v1168 = vlaneseq
  %v1169 = vshrl.u32 %v1168, 7
  %v1170 = vsub.s32 %v1167, %v1169
  %v1171 = vrot.slane %v1121, %v1170
  %v1173 = vunpack.c.l.s4 1966171168
  %v1174 = vunpack.c.0.s8 %v1173
  %v1175 = vlaneseq
  %v1176 = vshrl.u32 %v1175, 7
  %v1177 = vsub.s32 %v1174, %v1176
  %v1178 = vrot.slane %v1122, %v1177
  %v1179 = vcombine.low %v1129, %v1143
  %v1180 = vcombine.high %v1129, %v1143
  %v1181 = vcombine.low %v1136, %v1150
  %v1182 = vcombine.high %v1136, %v1150
  %v1183 = vcombine.low %v1157, %v1171
  %v1184 = vcombine.high %v1157, %v1171
  %v1185 = vcombine.low %v1164, %v1178
  %v1186 = vcombine.high %v1164, %v1178
  %v1188 = vunpack.c.l.s4 1966171168
  %v1189 = vunpack.c.0.s8 %v1188
  %v1190 = vlaneseq
  %v1191 = vshrl.u32 %v1190, 7
  %v1192 = vsub.s32 %v1189, %v1191
  %v1193 = vrot.slane %v1179, %v1192
  %v1195 = vunpack.c.l.s4 1966171168
  %v1196 = vunpack.c.0.s8 %v1195
  %v1197 = vlaneseq
  %v1198 = vshrl.u32 %v1197, 7
  %v1199 = vsub.s32 %v1196, %v1198
  %v1200 = vrot.slane %v1181, %v1199
  %v1202 = vunpack.c.l.s4 1966171168
  %v1203 = vunpack.c.0.s8 %v1202
  %v1204 = vlaneseq
  %v1205 = vshrl.u32 %v1204, 7
  %v1206 = vsub.s32 %v1203, %v1205
  %v1207 = vrot.slane %v1180, %v1206
  %v1209 = vunpack.c.l.s4 1966171168
  %v1210 = vunpack.c.0.s8 %v1209
  %v1211 = vlaneseq
  %v1212 = vshrl.u32 %v1211, 7
  %v1213 = vsub.s32 %v1210, %v1212
  %v1214 = vrot.slane %v1182, %v1213
  %v1216 = vunpack.c.l.s4 1966171168
  %v1217 = vunpack.c.0.s8 %v1216
  %v1218 = vlaneseq
  %v1219 = vshrl.u32 %v1218, 7
  %v1220 = vsub.s32 %v1217, %v1219
  %v1221 = vrot.slane %v1183, %v1220
  %v1223 = vunpack.c.l.s4 1966171168
  %v1224 = vunpack.c.0.s8 %v1223
  %v1225 = vlaneseq
  %v1226 = vshrl.u32 %v1225, 7
  %v1227 = vsub.s32 %v1224, %v1226
  %v1228 = vrot.slane %v1185, %v1227
  %v1230 = vunpack.c.l.s4 1966171168
  %v1231 = vunpack.c.0.s8 %v1230
  %v1232 = vlaneseq
  %v1233 = vshrl.u32 %v1232, 7
  %v1234 = vsub.s32 %v1231, %v1233
  %v1235 = vrot.slane %v1184, %v1234
  %v1237 = vunpack.c.l.s4 1966171168
  %v1238 = vunpack.c.0.s8 %v1237
  %v1239 = vlaneseq
  %v1240 = vshrl.u32 %v1239, 7
  %v1241 = vsub.s32 %v1238, %v1240
  %v1242 = vrot.slane %v1186, %v1241
  %v1243 = vcombine.low %v1193, %v1221
  %v1244 = vcombine.high %v1193, %v1221
  %v1245 = vcombine.low %v1200, %v1228
  %v1246 = vcombine.high %v1200, %v1228
  %v1247 = vcombine.low %v1207, %v1235
  %v1248 = vcombine.high %v1207, %v1235
  %v1249 = vcombine.low %v1214, %v1242
  %v1250 = vcombine.high %v1214, %v1242
  %v1251 = vcombine.low %v829, %v845
  %v1252 = vcombine.high %v829, %v845
  %v1253 = vcombine.low %v861, %v877
  %v1254 = vcombine.high %v861, %v877
  %v1255 = vcombine.low %v893, %v909
  %v1256 = vcombine.high %v893, %v909
  %v1257 = vcombine.low %v925, %v941
  %v1258 = vcombine.high %v925, %v941
  %v1260 = vunpack.c.l.s4 1966171168
  %v1261 = vunpack.c.0.s8 %v1260
  %v1262 = vlaneseq
  %v1263 = vshrl.u32 %v1262, 7
  %v1264 = vsub.s32 %v1261, %v1263
  %v1265 = vrot.slane %v1251, %v1264
  %v1267 = vunpack.c.l.s4 1966171168
  %v1268 = vunpack.c.0.s8 %v1267
  %v1269 = vlaneseq
  %v1270 = vshrl.u32 %v1269, 7
  %v1271 = vsub.s32 %v1268, %v1270
  %v1272 = vrot.slane %v1252, %v1271
  %v1274 = vunpack.c.l.s4 1966171168
  %v1275 = vunpack.c.0.s8 %v1274
  %v1276 = vlaneseq
  %v1277 = vshrl.u32 %v1276, 7
  %v1278 = vsub.s32 %v1275, %v1277
  %v1279 = vrot.slane %v1253, %v1278
  %v1281 = vunpack.c.l.s4 1966171168
  %v1282 = vunpack.c.0.s8 %v1281
  %v1283 = vlaneseq
  %v1284 = vshrl.u32 %v1283, 7
  %v1285 = vsub.s32 %v1282, %v1284
  %v1286 = vrot.slane %v1254, %v1285
  %v1288 = vunpack.c.l.s4 1966171168
  %v1289 = vunpack.c.0.s8 %v1288
  %v1290 = vlaneseq
  %v1291 = vshrl.u32 %v1290, 7
  %v1292 = vsub.s32 %v1289, %v1291
  %v1293 = vrot.slane %v1255, %v1292
  %v1295 = vunpack.c.l.s4 1966171168
  %v1296 = vunpack.c.0.s8 %v1295
  %v1297 = vlaneseq
  %v1298 = vshrl.u32 %v1297, 7
  %v1299 = vsub.s32 %v1296, %v1298
  %v1300 = vrot.slane %v1256, %v1299
  %v1302 = vunpack.c.l.s4 1966171168
  %v1303 = vunpack.c.0.s8 %v1302
  %v1304 = vlaneseq
  %v1305 = vshrl.u32 %v1304, 7
  %v1306 = vsub.s32 %v1303, %v1305
  %v1307 = vrot.slane %v1257, %v1306
  %v1309 = vunpack.c.l.s4 1966171168
  %v1310 = vunpack.c.0.s8 %v1309
  %v1311 = vlaneseq
  %v1312 = vshrl.u32 %v1311, 7
  %v1313 = vsub.s32 %v1310, %v1312
  %v1314 = vrot.slane %v1258, %v1313
  %v1315 = vcombine.low %v1265, %v1279
  %v1316 = vcombine.high %v1265, %v1279
  %v1317 = vcombine.low %v1272, %v1286
  %v1318 = vcombine.high %v1272, %v1286
  %v1319 = vcombine.low %v1293, %v1307
  %v1320 = vcombine.high %v1293, %v1307
  %v1321 = vcombine.low %v1300, %v1314
  %v1322 = vcombine.high %v1300, %v1314
  %v1324 = vunpack.c.l.s4 1966171168
  %v1325 = vunpack.c.0.s8 %v1324
  %v1326 = vlaneseq
  %v1327 = vshrl.u32 %v1326, 7
  %v1328 = vsub.s32 %v1325, %v1327
  %v1329 = vrot.slane %v1315, %v1328
  %v1331 = vunpack.c.l.s4 1966171168
  %v1332 = vunpack.c.0.s8 %v1331
  %v1333 = vlaneseq
  %v1334 = vshrl.u32 %v1333, 7
  %v1335 = vsub.s32 %v1332, %v1334
  %v1336 = vrot.slane %v1317, %v1335
  %v1338 = vunpack.c.l.s4 1966171168
  %v1339 = vunpack.c.0.s8 %v1338
  %v1340 = vlaneseq
  %v1341 = vshrl.u32 %v1340, 7
  %v1342 = vsub.s32 %v1339, %v1341
  %v1343 = vrot.slane %v1316, %v1342
  %v1345 = vunpack.c.l.s4 1966171168
  %v1346 = vunpack.c.0.s8 %v1345
  %v1347 = vlaneseq
  %v1348 = vshrl.u32 %v1347, 7
  %v1349 = vsub.s32 %v1346, %v1348
  %v1350 = vrot.slane %v1318, %v1349
  %v1352 = vunpack.c.l.s4 1966171168
  %v1353 = vunpack.c.0.s8 %v1352
  %v1354 = vlaneseq
  %v1355 = vshrl.u32 %v1354, 7
  %v1356 = vsub.s32 %v1353, %v1355
  %v1357 = vrot.slane %v1319, %v1356
  %v1359 = vunpack.c.l.s4 1966171168
  %v1360 = vunpack.c.0.s8 %v1359
  %v1361 = vlaneseq
  %v1362 = vshrl.u32 %v1361, 7
  %v1363 = vsub.s32 %v1360, %v1362
  %v1364 = vrot.slane %v1321, %v1363
  %v1366 = vunpack.c.l.s4 1966171168
  %v1367 = vunpack.c.0.s8 %v1366
  %v1368 = vlaneseq
  %v1369 = vshrl.u32 %v1368, 7
  %v1370 = vsub.s32 %v1367, %v1369
  %v1371 = vrot.slane %v1320, %v1370
  %v1373 = vunpack.c.l.s4 1966171168
  %v1374 = vunpack.c.0.s8 %v1373
  %v1375 = vlaneseq
  %v1376 = vshrl.u32 %v1375, 7
  %v1377 = vsub.s32 %v1374, %v1376
  %v1378 = vrot.slane %v1322, %v1377
  %v1379 = vcombine.low %v1329, %v1357
  %v1380 = vcombine.high %v1329, %v1357
  %v1381 = vcombine.low %v1336, %v1364
  %v1382 = vcombine.high %v1336, %v1364
  %v1383 = vcombine.low %v1343, %v1371
  %v1384 = vcombine.high %v1343, %v1371
  %v1385 = vcombine.low %v1350, %v1378
  %v1386 = vcombine.high %v1350, %v1378
  %v1387 = vcombine.low %v832, %v848
  %v1388 = vcombine.high %v832, %v848
  %v1389 = vcombine.low %v864, %v880
  %v1390 = vcombine.high %v864, %v880
  %v1391 = vcombine.low %v896, %v912
  %v1392 = vcombine.high %v896, %v912
  %v1393 = vcombine.low %v928, %v944
  %v1394 = vcombine.high %v928, %v944
  %v1396 = vunpack.c.l.s4 1966171168
  %v1397 = vunpack.c.0.s8 %v1396
  %v1398 = vlaneseq
  %v1399 = vshrl.u32 %v1398, 7
  %v1400 = vsub.s32 %v1397, %v1399
  %v1401 = vrot.slane %v1387, %v1400
  %v1403 = vunpack.c.l.s4 1966171168
  %v1404 = vunpack.c.0.s8 %v1403
  %v1405 = vlaneseq
  %v1406 = vshrl.u32 %v1405, 7
  %v1407 = vsub.s32 %v1404, %v1406
  %v1408 = vrot.slane %v1388, %v1407
  %v1410 = vunpack.c.l.s4 1966171168
  %v1411 = vunpack.c.0.s8 %v1410
  %v1412 = vlaneseq
  %v1413 = vshrl.u32 %v1412, 7
  %v1414 = vsub.s32 %v1411, %v1413
  %v1415 = vrot.slane %v1389, %v1414
  %v1417 = vunpack.c.l.s4 1966171168
  %v1418 = vunpack.c.0.s8 %v1417
  %v1419 = vlaneseq
  %v1420 = vshrl.u32 %v1419, 7
  %v1421 = vsub.s32 %v1418, %v1420
  %v1422 = vrot.slane %v1390, %v1421
  %v1424 = vunpack.c.l.s4 1966171168
  %v1425 = vunpack.c.0.s8 %v1424
  %v1426 = vlaneseq
  %v1427 = vshrl.u32 %v1426, 7
  %v1428 = vsub.s32 %v1425, %v1427
  %v1429 = vrot.slane %v1391, %v1428
  %v1431 = vunpack.c.l.s4 1966171168
  %v1432 = vunpack.c.0.s8 %v1431
  %v1433 = vlaneseq
  %v1434 = vshrl.u32 %v1433, 7
  %v1435 = vsub.s32 %v1432, %v1434
  %v1436 = vrot.slane %v1392, %v1435
  %v1438 = vunpack.c.l.s4 1966171168
  %v1439 = vunpack.c.0.s8 %v1438
  %v1440 = vlaneseq
  %v1441 = vshrl.u32 %v1440, 7
  %v1442 = vsub.s32 %v1439, %v1441
  %v1443 = vrot.slane %v1393, %v1442
  %v1445 = vunpack.c.l.s4 1966171168
  %v1446 = vunpack.c.0.s8 %v1445
  %v1447 = vlaneseq
  %v1448 = vshrl.u32 %v1447, 7
  %v1449 = vsub.s32 %v1446, %v1448
  %v1450 = vrot.slane %v1394, %v1449
  %v1451 = vcombine.low %v1401, %v1415
  %v1452 = vcombine.high %v1401, %v1415
  %v1453 = vcombine.low %v1408, %v1422
  %v1454 = vcombine.high %v1408, %v1422
  %v1455 = vcombine.low %v1429, %v1443
  %v1456 = vcombine.high %v1429, %v1443
  %v1457 = vcombine.low %v1436, %v1450
  %v1458 = vcombine.high %v1436, %v1450
  %v1460 = vunpack.c.l.s4 1966171168
  %v1461 = vunpack.c.0.s8 %v1460
  %v1462 = vlaneseq
  %v1463 = vshrl.u32 %v1462, 7
  %v1464 = vsub.s32 %v1461, %v1463
  %v1465 = vrot.slane %v1451, %v1464
  %v1467 = vunpack.c.l.s4 1966171168
  %v1468 = vunpack.c.0.s8 %v1467
  %v1469 = vlaneseq
  %v1470 = vshrl.u32 %v1469, 7
  %v1471 = vsub.s32 %v1468, %v1470
  %v1472 = vrot.slane %v1453, %v1471
  %v1474 = vunpack.c.l.s4 1966171168
  %v1475 = vunpack.c.0.s8 %v1474
  %v1476 = vlaneseq
  %v1477 = vshrl.u32 %v1476, 7
  %v1478 = vsub.s32 %v1475, %v1477
  %v1479 = vrot.slane %v1452, %v1478
  %v1481 = vunpack.c.l.s4 1966171168
  %v1482 = vunpack.c.0.s8 %v1481
  %v1483 = vlaneseq
  %v1484 = vshrl.u32 %v1483, 7
  %v1485 = vsub.s32 %v1482, %v1484
  %v1486 = vrot.slane %v1454, %v1485
  %v1488 = vunpack.c.l.s4 1966171168
  %v1489 = vunpack.c.0.s8 %v1488
  %v1490 = vlaneseq
  %v1491 = vshrl.u32 %v1490, 7
  %v1492 = vsub.s32 %v1489, %v1491
  %v1493 = vrot.slane %v1455, %v1492
  %v1495 = vunpack.c.l.s4 1966171168
  %v1496 = vunpack.c.0.s8 %v1495
  %v1497 = vlaneseq
  %v1498 = vshrl.u32 %v1497, 7
  %v1499 = vsub.s32 %v1496, %v1498
  %v1500 = vrot.slane %v1457, %v1499
  %v1502 = vunpack.c.l.s4 1966171168
  %v1503 = vunpack.c.0.s8 %v1502
  %v1504 = vlaneseq
  %v1505 = vshrl.u32 %v1504, 7
  %v1506 = vsub.s32 %v1503, %v1505
  %v1507 = vrot.slane %v1456, %v1506
  %v1509 = vunpack.c.l.s4 1966171168
  %v1510 = vunpack.c.0.s8 %v1509
  %v1511 = vlaneseq
  %v1512 = vshrl.u32 %v1511, 7
  %v1513 = vsub.s32 %v1510, %v1512
  %v1514 = vrot.slane %v1458, %v1513
  %v1515 = vcombine.low %v1465, %v1493
  %v1516 = vcombine.high %v1465, %v1493
  %v1517 = vcombine.low %v1472, %v1500
  %v1518 = vcombine.high %v1472, %v1500
  %v1519 = vcombine.low %v1479, %v1507
  %v1520 = vcombine.high %v1479, %v1507
  %v1521 = vcombine.low %v1486, %v1514
  %v1522 = vcombine.high %v1486, %v1514
  %v1555 = vpack.c.bf16 %v1107, %v1107
  %v1556 = vpack.c.bf16 %v1111, %v1111
  %v1557 = vpack.c.bf16 %v1108, %v1108
  %v1558 = vpack.c.bf16 %v1112, %v1112
  %v1559 = vpack.c.bf16 %v1109, %v1109
  %v1560 = vpack.c.bf16 %v1113, %v1113
  %v1561 = vpack.c.bf16 %v1110, %v1110
  %v1562 = vpack.c.bf16 %v1114, %v1114
  %v1563 = vpack.c.bf16 %v1243, %v1243
  %v1564 = vpack.c.bf16 %v1247, %v1247
  %v1565 = vpack.c.bf16 %v1244, %v1244
  %v1566 = vpack.c.bf16 %v1248, %v1248
  %v1567 = vpack.c.bf16 %v1245, %v1245
  %v1568 = vpack.c.bf16 %v1249, %v1249
  %v1569 = vpack.c.bf16 %v1246, %v1246
  %v1570 = vpack.c.bf16 %v1250, %v1250
  %v1571 = vpack.c.bf16 %v1379, %v1379
  %v1572 = vpack.c.bf16 %v1383, %v1383
  %v1573 = vpack.c.bf16 %v1380, %v1380
  %v1574 = vpack.c.bf16 %v1384, %v1384
  %v1575 = vpack.c.bf16 %v1381, %v1381
  %v1576 = vpack.c.bf16 %v1385, %v1385
  %v1577 = vpack.c.bf16 %v1382, %v1382
  %v1578 = vpack.c.bf16 %v1386, %v1386
  %v1579 = vpack.c.bf16 %v1515, %v1515
  %v1580 = vpack.c.bf16 %v1519, %v1519
  %v1581 = vpack.c.bf16 %v1516, %v1516
  %v1582 = vpack.c.bf16 %v1520, %v1520
  %v1583 = vpack.c.bf16 %v1517, %v1517
  %v1584 = vpack.c.bf16 %v1521, %v1521
  %v1585 = vpack.c.bf16 %v1518, %v1518
  %v1586 = vpack.c.bf16 %v1522, %v1522
  %v1587 = vld [vmem:[%s3] sm:$0xf]
  %v1588 = vld [vmem:[%s3 + $0x4] sm:$0xf]
  %v1589 = vld [vmem:[%s3 + $0x8] sm:$0xf]
  %v1590 = vld [vmem:[%s3 + $0xc] sm:$0xf]
  %v1591 = vld [vmem:[%s3 + $0x10] sm:$0xf]
  %v1592 = vld [vmem:[%s3 + $0x14] sm:$0xf]
  %v1593 = vld [vmem:[%s3 + $0x18] sm:$0xf]
  %v1594 = vld [vmem:[%s3 + $0x1c] sm:$0xf]
  %v1603 = vunpack.c.l.b16 %v1587
  %v1604 = vunpack.c.l.b16 %v1588
  %v1605 = vunpack.c.l.b16 %v1589
  %v1606 = vunpack.c.l.b16 %v1590
  %v1607 = vunpack.c.l.b16 %v1591
  %v1608 = vunpack.c.l.b16 %v1592
  %v1609 = vunpack.c.l.b16 %v1593
  %v1610 = vunpack.c.l.b16 %v1594
  %v1611 = vpack.c.b16 %v1604, %v1603
  %v1612 = vpack.c.b16 %v1606, %v1605
  %v1613 = vpack.c.b16 %v1608, %v1607
  %v1614 = vpack.c.b16 %v1610, %v1609
  %vm1615 = vcmask 64512
  %v1617 = vsel %vm1615, %v1611, 0
  %v1620 = vsel %vm1615, %v1612, 0
  %v1623 = vsel %vm1615, %v1613, 0
  %v1626 = vsel %vm1615, %v1614, 0
  %vm1628 = vcmask 1043456
  %v1630 = vsel %vm1628, %v1555, 0
  %v1633 = vsel %vm1628, %v1556, 0
  %v1636 = vsel %vm1628, %v1557, 0
  %v1639 = vsel %vm1628, %v1558, 0
  %v1642 = vsel %vm1628, %v1559, 0
  %v1645 = vsel %vm1628, %v1560, 0
  %v1648 = vsel %vm1628, %v1561, 0
  %v1651 = vsel %vm1628, %v1562, 0
  %v1654 = vsel %vm1628, %v1563, 0
  %v1657 = vsel %vm1628, %v1564, 0
  %v1660 = vsel %vm1628, %v1565, 0
  %v1663 = vsel %vm1628, %v1566, 0
  %v1666 = vsel %vm1628, %v1567, 0
  %v1669 = vsel %vm1628, %v1568, 0
  %v1672 = vsel %vm1628, %v1569, 0
  %v1675 = vsel %vm1628, %v1570, 0
  %v1678 = vsel %vm1628, %v1571, 0
  %v1681 = vsel %vm1628, %v1572, 0
  %v1684 = vsel %vm1628, %v1573, 0
  %v1687 = vsel %vm1628, %v1574, 0
  %v1690 = vsel %vm1628, %v1575, 0
  %v1693 = vsel %vm1628, %v1576, 0
  %v1696 = vsel %vm1628, %v1577, 0
  %v1699 = vsel %vm1628, %v1578, 0
  %v1702 = vsel %vm1628, %v1579, 0
  %v1705 = vsel %vm1628, %v1580, 0
  %v1708 = vsel %vm1628, %v1581, 0
  %v1711 = vsel %vm1628, %v1582, 0
  %v1714 = vsel %vm1628, %v1583, 0
  %v1717 = vsel %vm1628, %v1584, 0
  %v1720 = vsel %vm1628, %v1585, 0
  %v1723 = vsel %vm1628, %v1586, 0
  %1725 = vmatprep.subr.bf16.mxu0 %v1633
  %1726 = vmatpush1.bf16.msra.mxu0 %v1630
  %1727 = vmatprep.subr.bf16.mxu0 0
  %1728 = vmatpush1.bf16.msra.mxu0 0
  %1729 = vmatprep.subr.bf16.mxu0 0
  %1730 = vmatpush1.bf16.msra.mxu0 0
  %1731 = vmatprep.subr.bf16.mxu0 0
  %1732 = vmatpush1.bf16.msra.mxu0 0
  %1733 = vmatprep.subr.bf16.mxu0 0
  %1734 = vmatpush1.bf16.msra.mxu0 0
  %1735 = vmatprep.subr.bf16.mxu0 0
  %1736 = vmatpush1.bf16.msra.mxu0 0
  %1737 = vmatprep.subr.bf16.mxu0 0
  %1738 = vmatpush1.bf16.msra.mxu0 0
  %1739 = vmatprep.subr.bf16.mxu0 0
  %1740 = vmatpush1.bf16.msra.mxu0 0
  %1741 = vmatprep.subr.bf16.mxu0 0
  %1742 = vmatpush1.bf16.msra.mxu0 0
  %1743 = vmatprep.subr.bf16.mxu0 0
  %1744 = vmatpush1.bf16.msra.mxu0 0
  %1745 = vmatprep.subr.bf16.mxu0 0
  %1746 = vmatpush1.bf16.msra.mxu0 0
  %1747 = vmatprep.subr.bf16.mxu0 0
  %1748 = vmatpush1.bf16.msra.mxu0 0
  %1749 = vmatprep.subr.bf16.mxu0 0
  %1750 = vmatpush1.bf16.msra.mxu0 0
  %1751 = vmatprep.subr.bf16.mxu0 0
  %1752 = vmatpush1.bf16.msra.mxu0 0
  %1753 = vmatprep.subr.bf16.mxu0 0
  %1754 = vmatpush1.bf16.msra.mxu0 0
  %1755 = vmatprep.subr.bf16.mxu0 0
  %1756 = vmatpush1.bf16.msra.mxu0 0
  %1757 = vmatprep.mubr.bf16.mxu0 0
  %1758 = vmatmul.mubr.bf16.gmra.mrb[0].mxu0 %v1617
  %v1759 = vpop.f32.mrb[0].mxu0
  %v1760 = vadd.f32 0.0, %v1759
  %v1761 = vpop.f32.mrb[0].mxu0
  %v1762 = vadd.f32 0.0, %v1761
  %v1763 = vpop.f32.mrb[0].mxu0
  %v1764 = vadd.f32 0.0, %v1763
  %v1765 = vpop.f32.mrb[0].mxu0
  %v1766 = vadd.f32 0.0, %v1765
  %1767 = vmatprep.mubr.bf16.mxu0 0
  %1768 = vmatmul.mubr.bf16.gmra.mrb[0].mxu0 %v1620
  %v1769 = vpop.f32.mrb[0].mxu0
  %v1770 = vadd.f32 0.0, %v1769
  %v1771 = vpop.f32.mrb[0].mxu0
  %v1772 = vadd.f32 0.0, %v1771
  %v1773 = vpop.f32.mrb[0].mxu0
  %v1774 = vadd.f32 0.0, %v1773
  %v1775 = vpop.f32.mrb[0].mxu0
  %v1776 = vadd.f32 0.0, %v1775
  %1777 = vmatprep.mubr.bf16.mxu0 0
  %1778 = vmatmul.mubr.bf16.gmra.mrb[0].mxu0 %v1623
  %v1779 = vpop.f32.mrb[0].mxu0
  %v1780 = vadd.f32 0.0, %v1779
  %v1781 = vpop.f32.mrb[0].mxu0
  %v1782 = vadd.f32 0.0, %v1781
  %v1783 = vpop.f32.mrb[0].mxu0
  %v1784 = vadd.f32 0.0, %v1783
  %v1785 = vpop.f32.mrb[0].mxu0
  %v1786 = vadd.f32 0.0, %v1785
  %1787 = vmatprep.mubr.bf16.mxu0 0
  %1788 = vmatmul.mubr.bf16.gmra.mrb[0].mxu0 %v1626
  %v1789 = vpop.f32.mrb[0].mxu0
  %v1790 = vadd.f32 0.0, %v1789
  %v1791 = vpop.f32.mrb[0].mxu0
  %v1792 = vadd.f32 0.0, %v1791
  %v1793 = vpop.f32.mrb[0].mxu0
  %v1794 = vadd.f32 0.0, %v1793
  %v1795 = vpop.f32.mrb[0].mxu0
  %v1796 = vadd.f32 0.0, %v1795
  %1797 = vdwg.mxu0
  %1798 = vmatprep.subr.bf16.mxu0 %v1639
  %1799 = vmatpush1.bf16.msra.mxu0 %v1636
  %1800 = vmatprep.subr.bf16.mxu0 0
  %1801 = vmatpush1.bf16.msra.mxu0 0
  %1802 = vmatprep.subr.bf16.mxu0 0
  %1803 = vmatpush1.bf16.msra.mxu0 0
  %1804 = vmatprep.subr.bf16.mxu0 0
  %1805 = vmatpush1.bf16.msra.mxu0 0
  %1806 = vmatprep.subr.bf16.mxu0 0
  %1807 = vmatpush1.bf16.msra.mxu0 0
  %1808 = vmatprep.subr.bf16.mxu0 0
  %1809 = vmatpush1.bf16.msra.mxu0 0
  %1810 = vmatprep.subr.bf16.mxu0 0
  %1811 = vmatpush1.bf16.msra.mxu0 0
  %1812 = vmatprep.subr.bf16.mxu0 0
  %1813 = vmatpush1.bf16.msra.mxu0 0
  %1814 = vmatprep.subr.bf16.mxu0 0
  %1815 = vmatpush1.bf16.msra.mxu0 0
  %1816 = vmatprep.subr.bf16.mxu0 0
  %1817 = vmatpush1.bf16.msra.mxu0 0
  %1818 = vmatprep.subr.bf16.mxu0 0
  %1819 = vmatpush1.bf16.msra.mxu0 0
  %1820 = vmatprep.subr.bf16.mxu0 0
  %1821 = vmatpush1.bf16.msra.mxu0 0
  %1822 = vmatprep.subr.bf16.mxu0 0
  %1823 = vmatpush1.bf16.msra.mxu0 0
  %1824 = vmatprep.subr.bf16.mxu0 0
  %1825 = vmatpush1.bf16.msra.mxu0 0
  %1826 = vmatprep.subr.bf16.mxu0 0
  %1827 = vmatpush1.bf16.msra.mxu0 0
  %1828 = vmatprep.subr.bf16.mxu0 0
  %1829 = vmatpush1.bf16.msra.mxu0 0
  %1830 = vmatprep.mubr.bf16.mxu0 0
  %1831 = vmatmul.mubr.bf16.gmra.mrb[0].mxu0 %v1617
  %v1832 = vpop.f32.mrb[0].mxu0
  %v1833 = vadd.f32 0.0, %v1832
  %v1834 = vpop.f32.mrb[0].mxu0
  %v1835 = vadd.f32 0.0, %v1834
  %v1836 = vpop.f32.mrb[0].mxu0
  %v1837 = vadd.f32 0.0, %v1836
  %v1838 = vpop.f32.mrb[0].mxu0
  %v1839 = vadd.f32 0.0, %v1838
  %1840 = vmatprep.mubr.bf16.mxu0 0
  %1841 = vmatmul.mubr.bf16.gmra.mrb[0].mxu0 %v1620
  %v1842 = vpop.f32.mrb[0].mxu0
  %v1843 = vadd.f32 0.0, %v1842
  %v1844 = vpop.f32.mrb[0].mxu0
  %v1845 = vadd.f32 0.0, %v1844
  %v1846 = vpop.f32.mrb[0].mxu0
  %v1847 = vadd.f32 0.0, %v1846
  %v1848 = vpop.f32.mrb[0].mxu0
  %v1849 = vadd.f32 0.0, %v1848
  %1850 = vmatprep.mubr.bf16.mxu0 0
  %1851 = vmatmul.mubr.bf16.gmra.mrb[0].mxu0 %v1623
  %v1852 = vpop.f32.mrb[0].mxu0
  %v1853 = vadd.f32 0.0, %v1852
  %v1854 = vpop.f32.mrb[0].mxu0
  %v1855 = vadd.f32 0.0, %v1854
  %v1856 = vpop.f32.mrb[0].mxu0
  %v1857 = vadd.f32 0.0, %v1856
  %v1858 = vpop.f32.mrb[0].mxu0
  %v1859 = vadd.f32 0.0, %v1858
  %1860 = vmatprep.mubr.bf16.mxu0 0
  %1861 = vmatmul.mubr.bf16.gmra.mrb[0].mxu0 %v1626
  %v1862 = vpop.f32.mrb[0].mxu0
  %v1863 = vadd.f32 0.0, %v1862
  %v1864 = vpop.f32.mrb[0].mxu0
  %v1865 = vadd.f32 0.0, %v1864
  %v1866 = vpop.f32.mrb[0].mxu0
  %v1867 = vadd.f32 0.0, %v1866
  %v1868 = vpop.f32.mrb[0].mxu0
  %v1869 = vadd.f32 0.0, %v1868
  %1870 = vdwg.mxu0
  %1871 = vmatprep.subr.bf16.mxu0 %v1645
  %1872 = vmatpush1.bf16.msra.mxu0 %v1642
  %1873 = vmatprep.subr.bf16.mxu0 0
  %1874 = vmatpush1.bf16.msra.mxu0 0
  %1875 = vmatprep.subr.bf16.mxu0 0
  %1876 = vmatpush1.bf16.msra.mxu0 0
  %1877 = vmatprep.subr.bf16.mxu0 0
  %1878 = vmatpush1.bf16.msra.mxu0 0
  %1879 = vmatprep.subr.bf16.mxu0 0
  %1880 = vmatpush1.bf16.msra.mxu0 0
  %1881 = vmatprep.subr.bf16.mxu0 0
  %1882 = vmatpush1.bf16.msra.mxu0 0
  %1883 = vmatprep.subr.bf16.mxu0 0
  %1884 = vmatpush1.bf16.msra.mxu0 0
  %1885 = vmatprep.subr.bf16.mxu0 0
  %1886 = vmatpush1.bf16.msra.mxu0 0
  %1887 = vmatprep.subr.bf16.mxu0 0
  %1888 = vmatpush1.bf16.msra.mxu0 0
  %1889 = vmatprep.subr.bf16.mxu0 0
  %1890 = vmatpush1.bf16.msra.mxu0 0
  %1891 = vmatprep.subr.bf16.mxu0 0
  %1892 = vmatpush1.bf16.msra.mxu0 0
  %1893 = vmatprep.subr.bf16.mxu0 0
  %1894 = vmatpush1.bf16.msra.mxu0 0
  %1895 = vmatprep.subr.bf16.mxu0 0
  %1896 = vmatpush1.bf16.msra.mxu0 0
  %1897 = vmatprep.subr.bf16.mxu0 0
  %1898 = vmatpush1.bf16.msra.mxu0 0
  %1899 = vmatprep.subr.bf16.mxu0 0
  %1900 = vmatpush1.bf16.msra.mxu0 0
  %1901 = vmatprep.subr.bf16.mxu0 0
  %1902 = vmatpush1.bf16.msra.mxu0 0
  %1903 = vmatprep.mubr.bf16.mxu0 0
  %1904 = vmatmul.mubr.bf16.gmra.mrb[0].mxu0 %v1617
  %v1905 = vpop.f32.mrb[0].mxu0
  %v1906 = vadd.f32 0.0, %v1905
  %v1907 = vpop.f32.mrb[0].mxu0
  %v1908 = vadd.f32 0.0, %v1907
  %v1909 = vpop.f32.mrb[0].mxu0
  %v1910 = vadd.f32 0.0, %v1909
  %v1911 = vpop.f32.mrb[0].mxu0
  %v1912 = vadd.f32 0.0, %v1911
  %1913 = vmatprep.mubr.bf16.mxu0 0
  %1914 = vmatmul.mubr.bf16.gmra.mrb[0].mxu0 %v1620
  %v1915 = vpop.f32.mrb[0].mxu0
  %v1916 = vadd.f32 0.0, %v1915
  %v1917 = vpop.f32.mrb[0].mxu0
  %v1918 = vadd.f32 0.0, %v1917
  %v1919 = vpop.f32.mrb[0].mxu0
  %v1920 = vadd.f32 0.0, %v1919
  %v1921 = vpop.f32.mrb[0].mxu0
  %v1922 = vadd.f32 0.0, %v1921
  %1923 = vmatprep.mubr.bf16.mxu0 0
  %1924 = vmatmul.mubr.bf16.gmra.mrb[0].mxu0 %v1623
  %v1925 = vpop.f32.mrb[0].mxu0
  %v1926 = vadd.f32 0.0, %v1925
  %v1927 = vpop.f32.mrb[0].mxu0
  %v1928 = vadd.f32 0.0, %v1927
  %v1929 = vpop.f32.mrb[0].mxu0
  %v1930 = vadd.f32 0.0, %v1929
  %v1931 = vpop.f32.mrb[0].mxu0
  %v1932 = vadd.f32 0.0, %v1931
  %1933 = vmatprep.mubr.bf16.mxu0 0
  %1934 = vmatmul.mubr.bf16.gmra.mrb[0].mxu0 %v1626
  %v1935 = vpop.f32.mrb[0].mxu0
  %v1936 = vadd.f32 0.0, %v1935
  %v1937 = vpop.f32.mrb[0].mxu0
  %v1938 = vadd.f32 0.0, %v1937
  %v1939 = vpop.f32.mrb[0].mxu0
  %v1940 = vadd.f32 0.0, %v1939
  %v1941 = vpop.f32.mrb[0].mxu0
  %v1942 = vadd.f32 0.0, %v1941
  %1943 = vdwg.mxu0
  %1944 = vmatprep.subr.bf16.mxu0 %v1651
  %1945 = vmatpush1.bf16.msra.mxu0 %v1648
  %1946 = vmatprep.subr.bf16.mxu0 0
  %1947 = vmatpush1.bf16.msra.mxu0 0
  %1948 = vmatprep.subr.bf16.mxu0 0
  %1949 = vmatpush1.bf16.msra.mxu0 0
  %1950 = vmatprep.subr.bf16.mxu0 0
  %1951 = vmatpush1.bf16.msra.mxu0 0
  %1952 = vmatprep.subr.bf16.mxu0 0
  %1953 = vmatpush1.bf16.msra.mxu0 0
  %1954 = vmatprep.subr.bf16.mxu0 0
  %1955 = vmatpush1.bf16.msra.mxu0 0
  %1956 = vmatprep.subr.bf16.mxu0 0
  %1957 = vmatpush1.bf16.msra.mxu0 0
  %1958 = vmatprep.subr.bf16.mxu0 0
  %1959 = vmatpush1.bf16.msra.mxu0 0
  %1960 = vmatprep.subr.bf16.mxu0 0
  %1961 = vmatpush1.bf16.msra.mxu0 0
  %1962 = vmatprep.subr.bf16.mxu0 0
  %1963 = vmatpush1.bf16.msra.mxu0 0
  %1964 = vmatprep.subr.bf16.mxu0 0
  %1965 = vmatpush1.bf16.msra.mxu0 0
  %1966 = vmatprep.subr.bf16.mxu0 0
  %1967 = vmatpush1.bf16.msra.mxu0 0
  %1968 = vmatprep.subr.bf16.mxu0 0
  %1969 = vmatpush1.bf16.msra.mxu0 0
  %1970 = vmatprep.subr.bf16.mxu0 0
  %1971 = vmatpush1.bf16.msra.mxu0 0
  %1972 = vmatprep.subr.bf16.mxu0 0
  %1973 = vmatpush1.bf16.msra.mxu0 0
  %1974 = vmatprep.subr.bf16.mxu0 0
  %1975 = vmatpush1.bf16.msra.mxu0 0
  %1976 = vmatprep.mubr.bf16.mxu0 0
  %1977 = vmatmul.mubr.bf16.gmra.mrb[0].mxu0 %v1617
  %v1978 = vpop.f32.mrb[0].mxu0
  %v1979 = vadd.f32 0.0, %v1978
  %v1980 = vpop.f32.mrb[0].mxu0
  %v1981 = vadd.f32 0.0, %v1980
  %v1982 = vpop.f32.mrb[0].mxu0
  %v1983 = vadd.f32 0.0, %v1982
  %v1984 = vpop.f32.mrb[0].mxu0
  %v1985 = vadd.f32 0.0, %v1984
  %1986 = vmatprep.mubr.bf16.mxu0 0
  %1987 = vmatmul.mubr.bf16.gmra.mrb[0].mxu0 %v1620
  %v1988 = vpop.f32.mrb[0].mxu0
  %v1989 = vadd.f32 0.0, %v1988
  %v1990 = vpop.f32.mrb[0].mxu0
  %v1991 = vadd.f32 0.0, %v1990
  %v1992 = vpop.f32.mrb[0].mxu0
  %v1993 = vadd.f32 0.0, %v1992
  %v1994 = vpop.f32.mrb[0].mxu0
  %v1995 = vadd.f32 0.0, %v1994
  %1996 = vmatprep.mubr.bf16.mxu0 0
  %1997 = vmatmul.mubr.bf16.gmra.mrb[0].mxu0 %v1623
  %v1998 = vpop.f32.mrb[0].mxu0
  %v1999 = vadd.f32 0.0, %v1998
  %v2000 = vpop.f32.mrb[0].mxu0
  %v2001 = vadd.f32 0.0, %v2000
  %v2002 = vpop.f32.mrb[0].mxu0
  %v2003 = vadd.f32 0.0, %v2002
  %v2004 = vpop.f32.mrb[0].mxu0
  %v2005 = vadd.f32 0.0, %v2004
  %2006 = vmatprep.mubr.bf16.mxu0 0
  %2007 = vmatmul.mubr.bf16.gmra.mrb[0].mxu0 %v1626
  %v2008 = vpop.f32.mrb[0].mxu0
  %v2009 = vadd.f32 0.0, %v2008
  %v2010 = vpop.f32.mrb[0].mxu0
  %v2011 = vadd.f32 0.0, %v2010
  %v2012 = vpop.f32.mrb[0].mxu0
  %v2013 = vadd.f32 0.0, %v2012
  %v2014 = vpop.f32.mrb[0].mxu0
  %v2015 = vadd.f32 0.0, %v2014
  %2016 = vdwg.mxu0
  %2017 = vmatprep.subr.bf16.mxu0 %v1657
  %2018 = vmatpush1.bf16.msra.mxu0 %v1654
  %2019 = vmatprep.subr.bf16.mxu0 0
  %2020 = vmatpush1.bf16.msra.mxu0 0
  %2021 = vmatprep.subr.bf16.mxu0 0
  %2022 = vmatpush1.bf16.msra.mxu0 0
  %2023 = vmatprep.subr.bf16.mxu0 0
  %2024 = vmatpush1.bf16.msra.mxu0 0
  %2025 = vmatprep.subr.bf16.mxu0 0
  %2026 = vmatpush1.bf16.msra.mxu0 0
  %2027 = vmatprep.subr.bf16.mxu0 0
  %2028 = vmatpush1.bf16.msra.mxu0 0
  %2029 = vmatprep.subr.bf16.mxu0 0
  %2030 = vmatpush1.bf16.msra.mxu0 0
  %2031 = vmatprep.subr.bf16.mxu0 0
  %2032 = vmatpush1.bf16.msra.mxu0 0
  %2033 = vmatprep.subr.bf16.mxu0 0
  %2034 = vmatpush1.bf16.msra.mxu0 0
  %2035 = vmatprep.subr.bf16.mxu0 0
  %2036 = vmatpush1.bf16.msra.mxu0 0
  %2037 = vmatprep.subr.bf16.mxu0 0
  %2038 = vmatpush1.bf16.msra.mxu0 0
  %2039 = vmatprep.subr.bf16.mxu0 0
  %2040 = vmatpush1.bf16.msra.mxu0 0
  %2041 = vmatprep.subr.bf16.mxu0 0
  %2042 = vmatpush1.bf16.msra.mxu0 0
  %2043 = vmatprep.subr.bf16.mxu0 0
  %2044 = vmatpush1.bf16.msra.mxu0 0
  %2045 = vmatprep.subr.bf16.mxu0 0
  %2046 = vmatpush1.bf16.msra.mxu0 0
  %2047 = vmatprep.subr.bf16.mxu0 0
  %2048 = vmatpush1.bf16.msra.mxu0 0
  %2049 = vmatprep.mubr.bf16.mxu0 0
  %2050 = vmatmul.mubr.bf16.gmra.mrb[0].mxu0 %v1617
  %v2051 = vpop.f32.mrb[0].mxu0
  %v2052 = vadd.f32 0.0, %v2051
  %v2053 = vpop.f32.mrb[0].mxu0
  %v2054 = vadd.f32 0.0, %v2053
  %v2055 = vpop.f32.mrb[0].mxu0
  %v2056 = vadd.f32 0.0, %v2055
  %v2057 = vpop.f32.mrb[0].mxu0
  %v2058 = vadd.f32 0.0, %v2057
  %2059 = vmatprep.mubr.bf16.mxu0 0
  %2060 = vmatmul.mubr.bf16.gmra.mrb[0].mxu0 %v1620
  %v2061 = vpop.f32.mrb[0].mxu0
  %v2062 = vadd.f32 0.0, %v2061
  %v2063 = vpop.f32.mrb[0].mxu0
  %v2064 = vadd.f32 0.0, %v2063
  %v2065 = vpop.f32.mrb[0].mxu0
  %v2066 = vadd.f32 0.0, %v2065
  %v2067 = vpop.f32.mrb[0].mxu0
  %v2068 = vadd.f32 0.0, %v2067
  %2069 = vmatprep.mubr.bf16.mxu0 0
  %2070 = vmatmul.mubr.bf16.gmra.mrb[0].mxu0 %v1623
  %v2071 = vpop.f32.mrb[0].mxu0
  %v2072 = vadd.f32 0.0, %v2071
  %v2073 = vpop.f32.mrb[0].mxu0
  %v2074 = vadd.f32 0.0, %v2073
  %v2075 = vpop.f32.mrb[0].mxu0
  %v2076 = vadd.f32 0.0, %v2075
  %v2077 = vpop.f32.mrb[0].mxu0
  %v2078 = vadd.f32 0.0, %v2077
  %2079 = vmatprep.mubr.bf16.mxu0 0
  %2080 = vmatmul.mubr.bf16.gmra.mrb[0].mxu0 %v1626
  %v2081 = vpop.f32.mrb[0].mxu0
  %v2082 = vadd.f32 0.0, %v2081
  %v2083 = vpop.f32.mrb[0].mxu0
  %v2084 = vadd.f32 0.0, %v2083
  %v2085 = vpop.f32.mrb[0].mxu0
  %v2086 = vadd.f32 0.0, %v2085
  %v2087 = vpop.f32.mrb[0].mxu0
  %v2088 = vadd.f32 0.0, %v2087
  %2089 = vdwg.mxu0
  %2090 = vmatprep.subr.bf16.mxu0 %v1663
  %2091 = vmatpush1.bf16.msra.mxu0 %v1660
  %2092 = vmatprep.subr.bf16.mxu0 0
  %2093 = vmatpush1.bf16.msra.mxu0 0
  %2094 = vmatprep.subr.bf16.mxu0 0
  %2095 = vmatpush1.bf16.msra.mxu0 0
  %2096 = vmatprep.subr.bf16.mxu0 0
  %2097 = vmatpush1.bf16.msra.mxu0 0
  %2098 = vmatprep.subr.bf16.mxu0 0
  %2099 = vmatpush1.bf16.msra.mxu0 0
  %2100 = vmatprep.subr.bf16.mxu0 0
  %2101 = vmatpush1.bf16.msra.mxu0 0
  %2102 = vmatprep.subr.bf16.mxu0 0
  %2103 = vmatpush1.bf16.msra.mxu0 0
  %2104 = vmatprep.subr.bf16.mxu0 0
  %2105 = vmatpush1.bf16.msra.mxu0 0
  %2106 = vmatprep.subr.bf16.mxu0 0
  %2107 = vmatpush1.bf16.msra.mxu0 0
  %2108 = vmatprep.subr.bf16.mxu0 0
  %2109 = vmatpush1.bf16.msra.mxu0 0
  %2110 = vmatprep.subr.bf16.mxu0 0
  %2111 = vmatpush1.bf16.msra.mxu0 0
  %2112 = vmatprep.subr.bf16.mxu0 0
  %2113 = vmatpush1.bf16.msra.mxu0 0
  %2114 = vmatprep.subr.bf16.mxu0 0
  %2115 = vmatpush1.bf16.msra.mxu0 0
  %2116 = vmatprep.subr.bf16.mxu0 0
  %2117 = vmatpush1.bf16.msra.mxu0 0
  %2118 = vmatprep.subr.bf16.mxu0 0
  %2119 = vmatpush1.bf16.msra.mxu0 0
  %2120 = vmatprep.subr.bf16.mxu0 0
  %2121 = vmatpush1.bf16.msra.mxu0 0
  %2122 = vmatprep.mubr.bf16.mxu0 0
  %2123 = vmatmul.mubr.bf16.gmra.mrb[0].mxu0 %v1617
  %v2124 = vpop.f32.mrb[0].mxu0
  %v2125 = vadd.f32 0.0, %v2124
  %v2126 = vpop.f32.mrb[0].mxu0
  %v2127 = vadd.f32 0.0, %v2126
  %v2128 = vpop.f32.mrb[0].mxu0
  %v2129 = vadd.f32 0.0, %v2128
  %v2130 = vpop.f32.mrb[0].mxu0
  %v2131 = vadd.f32 0.0, %v2130
  %2132 = vmatprep.mubr.bf16.mxu0 0
  %2133 = vmatmul.mubr.bf16.gmra.mrb[0].mxu0 %v1620
  %v2134 = vpop.f32.mrb[0].mxu0
  %v2135 = vadd.f32 0.0, %v2134
  %v2136 = vpop.f32.mrb[0].mxu0
  %v2137 = vadd.f32 0.0, %v2136
  %v2138 = vpop.f32.mrb[0].mxu0
  %v2139 = vadd.f32 0.0, %v2138
  %v2140 = vpop.f32.mrb[0].mxu0
  %v2141 = vadd.f32 0.0, %v2140
  %2142 = vmatprep.mubr.bf16.mxu0 0
  %2143 = vmatmul.mubr.bf16.gmra.mrb[0].mxu0 %v1623
  %v2144 = vpop.f32.mrb[0].mxu0
  %v2145 = vadd.f32 0.0, %v2144
  %v2146 = vpop.f32.mrb[0].mxu0
  %v2147 = vadd.f32 0.0, %v2146
  %v2148 = vpop.f32.mrb[0].mxu0
  %v2149 = vadd.f32 0.0, %v2148
  %v2150 = vpop.f32.mrb[0].mxu0
  %v2151 = vadd.f32 0.0, %v2150
  %2152 = vmatprep.mubr.bf16.mxu0 0
  %2153 = vmatmul.mubr.bf16.gmra.mrb[0].mxu0 %v1626
  %v2154 = vpop.f32.mrb[0].mxu0
  %v2155 = vadd.f32 0.0, %v2154
  %v2156 = vpop.f32.mrb[0].mxu0
  %v2157 = vadd.f32 0.0, %v2156
  %v2158 = vpop.f32.mrb[0].mxu0
  %v2159 = vadd.f32 0.0, %v2158
  %v2160 = vpop.f32.mrb[0].mxu0
  %v2161 = vadd.f32 0.0, %v2160
  %2162 = vdwg.mxu0
  %2163 = vmatprep.subr.bf16.mxu0 %v1669
  %2164 = vmatpush1.bf16.msra.mxu0 %v1666
  %2165 = vmatprep.subr.bf16.mxu0 0
  %2166 = vmatpush1.bf16.msra.mxu0 0
  %2167 = vmatprep.subr.bf16.mxu0 0
  %2168 = vmatpush1.bf16.msra.mxu0 0
  %2169 = vmatprep.subr.bf16.mxu0 0
  %2170 = vmatpush1.bf16.msra.mxu0 0
  %2171 = vmatprep.subr.bf16.mxu0 0
  %2172 = vmatpush1.bf16.msra.mxu0 0
  %2173 = vmatprep.subr.bf16.mxu0 0
  %2174 = vmatpush1.bf16.msra.mxu0 0
  %2175 = vmatprep.subr.bf16.mxu0 0
  %2176 = vmatpush1.bf16.msra.mxu0 0
  %2177 = vmatprep.subr.bf16.mxu0 0
  %2178 = vmatpush1.bf16.msra.mxu0 0
  %2179 = vmatprep.subr.bf16.mxu0 0
  %2180 = vmatpush1.bf16.msra.mxu0 0
  %2181 = vmatprep.subr.bf16.mxu0 0
  %2182 = vmatpush1.bf16.msra.mxu0 0
  %2183 = vmatprep.subr.bf16.mxu0 0
  %2184 = vmatpush1.bf16.msra.mxu0 0
  %2185 = vmatprep.subr.bf16.mxu0 0
  %2186 = vmatpush1.bf16.msra.mxu0 0
  %2187 = vmatprep.subr.bf16.mxu0 0
  %2188 = vmatpush1.bf16.msra.mxu0 0
  %2189 = vmatprep.subr.bf16.mxu0 0
  %2190 = vmatpush1.bf16.msra.mxu0 0
  %2191 = vmatprep.subr.bf16.mxu0 0
  %2192 = vmatpush1.bf16.msra.mxu0 0
  %2193 = vmatprep.subr.bf16.mxu0 0
  %2194 = vmatpush1.bf16.msra.mxu0 0
  %2195 = vmatprep.mubr.bf16.mxu0 0
  %2196 = vmatmul.mubr.bf16.gmra.mrb[0].mxu0 %v1617
  %v2197 = vpop.f32.mrb[0].mxu0
  %v2198 = vadd.f32 0.0, %v2197
  %v2199 = vpop.f32.mrb[0].mxu0
  %v2200 = vadd.f32 0.0, %v2199
  %v2201 = vpop.f32.mrb[0].mxu0
  %v2202 = vadd.f32 0.0, %v2201
  %v2203 = vpop.f32.mrb[0].mxu0
  %v2204 = vadd.f32 0.0, %v2203
  %2205 = vmatprep.mubr.bf16.mxu0 0
  %2206 = vmatmul.mubr.bf16.gmra.mrb[0].mxu0 %v1620
  %v2207 = vpop.f32.mrb[0].mxu0
  %v2208 = vadd.f32 0.0, %v2207
  %v2209 = vpop.f32.mrb[0].mxu0
  %v2210 = vadd.f32 0.0, %v2209
  %v2211 = vpop.f32.mrb[0].mxu0
  %v2212 = vadd.f32 0.0, %v2211
  %v2213 = vpop.f32.mrb[0].mxu0
  %v2214 = vadd.f32 0.0, %v2213
  %2215 = vmatprep.mubr.bf16.mxu0 0
  %2216 = vmatmul.mubr.bf16.gmra.mrb[0].mxu0 %v1623
  %v2217 = vpop.f32.mrb[0].mxu0
  %v2218 = vadd.f32 0.0, %v2217
  %v2219 = vpop.f32.mrb[0].mxu0
  %v2220 = vadd.f32 0.0, %v2219
  %v2221 = vpop.f32.mrb[0].mxu0
  %v2222 = vadd.f32 0.0, %v2221
  %v2223 = vpop.f32.mrb[0].mxu0
  %v2224 = vadd.f32 0.0, %v2223
  %2225 = vmatprep.mubr.bf16.mxu0 0
  %2226 = vmatmul.mubr.bf16.gmra.mrb[0].mxu0 %v1626
  %v2227 = vpop.f32.mrb[0].mxu0
  %v2228 = vadd.f32 0.0, %v2227
  %v2229 = vpop.f32.mrb[0].mxu0
  %v2230 = vadd.f32 0.0, %v2229
  %v2231 = vpop.f32.mrb[0].mxu0
  %v2232 = vadd.f32 0.0, %v2231
  %v2233 = vpop.f32.mrb[0].mxu0
  %v2234 = vadd.f32 0.0, %v2233
  %2235 = vdwg.mxu0
  %2236 = vmatprep.subr.bf16.mxu0 %v1675
  %2237 = vmatpush1.bf16.msra.mxu0 %v1672
  %2238 = vmatprep.subr.bf16.mxu0 0
  %2239 = vmatpush1.bf16.msra.mxu0 0
  %2240 = vmatprep.subr.bf16.mxu0 0
  %2241 = vmatpush1.bf16.msra.mxu0 0
  %2242 = vmatprep.subr.bf16.mxu0 0
  %2243 = vmatpush1.bf16.msra.mxu0 0
  %2244 = vmatprep.subr.bf16.mxu0 0
  %2245 = vmatpush1.bf16.msra.mxu0 0
  %2246 = vmatprep.subr.bf16.mxu0 0
  %2247 = vmatpush1.bf16.msra.mxu0 0
  %2248 = vmatprep.subr.bf16.mxu0 0
  %2249 = vmatpush1.bf16.msra.mxu0 0
  %2250 = vmatprep.subr.bf16.mxu0 0
  %2251 = vmatpush1.bf16.msra.mxu0 0
  %2252 = vmatprep.subr.bf16.mxu0 0
  %2253 = vmatpush1.bf16.msra.mxu0 0
  %2254 = vmatprep.subr.bf16.mxu0 0
  %2255 = vmatpush1.bf16.msra.mxu0 0
  %2256 = vmatprep.subr.bf16.mxu0 0
  %2257 = vmatpush1.bf16.msra.mxu0 0
  %2258 = vmatprep.subr.bf16.mxu0 0
  %2259 = vmatpush1.bf16.msra.mxu0 0
  %2260 = vmatprep.subr.bf16.mxu0 0
  %2261 = vmatpush1.bf16.msra.mxu0 0
  %2262 = vmatprep.subr.bf16.mxu0 0
  %2263 = vmatpush1.bf16.msra.mxu0 0
  %2264 = vmatprep.subr.bf16.mxu0 0
  %2265 = vmatpush1.bf16.msra.mxu0 0
  %2266 = vmatprep.subr.bf16.mxu0 0
  %2267 = vmatpush1.bf16.msra.mxu0 0
  %2268 = vmatprep.mubr.bf16.mxu0 0
  %2269 = vmatmul.mubr.bf16.gmra.mrb[0].mxu0 %v1617
  %v2270 = vpop.f32.mrb[0].mxu0
  %v2271 = vadd.f32 0.0, %v2270
  %v2272 = vpop.f32.mrb[0].mxu0
  %v2273 = vadd.f32 0.0, %v2272
  %v2274 = vpop.f32.mrb[0].mxu0
  %v2275 = vadd.f32 0.0, %v2274
  %v2276 = vpop.f32.mrb[0].mxu0
  %v2277 = vadd.f32 0.0, %v2276
  %2278 = vmatprep.mubr.bf16.mxu0 0
  %2279 = vmatmul.mubr.bf16.gmra.mrb[0].mxu0 %v1620
  %v2280 = vpop.f32.mrb[0].mxu0
  %v2281 = vadd.f32 0.0, %v2280
  %v2282 = vpop.f32.mrb[0].mxu0
  %v2283 = vadd.f32 0.0, %v2282
  %v2284 = vpop.f32.mrb[0].mxu0
  %v2285 = vadd.f32 0.0, %v2284
  %v2286 = vpop.f32.mrb[0].mxu0
  %v2287 = vadd.f32 0.0, %v2286
  %2288 = vmatprep.mubr.bf16.mxu0 0
  %2289 = vmatmul.mubr.bf16.gmra.mrb[0].mxu0 %v1623
  %v2290 = vpop.f32.mrb[0].mxu0
  %v2291 = vadd.f32 0.0, %v2290
  %v2292 = vpop.f32.mrb[0].mxu0
  %v2293 = vadd.f32 0.0, %v2292
  %v2294 = vpop.f32.mrb[0].mxu0
  %v2295 = vadd.f32 0.0, %v2294
  %v2296 = vpop.f32.mrb[0].mxu0
  %v2297 = vadd.f32 0.0, %v2296
  %2298 = vmatprep.mubr.bf16.mxu0 0
  %2299 = vmatmul.mubr.bf16.gmra.mrb[0].mxu0 %v1626
  %v2300 = vpop.f32.mrb[0].mxu0
  %v2301 = vadd.f32 0.0, %v2300
  %v2302 = vpop.f32.mrb[0].mxu0
  %v2303 = vadd.f32 0.0, %v2302
  %v2304 = vpop.f32.mrb[0].mxu0
  %v2305 = vadd.f32 0.0, %v2304
  %v2306 = vpop.f32.mrb[0].mxu0
  %v2307 = vadd.f32 0.0, %v2306
  %2308 = vdwg.mxu0
  %2309 = vmatprep.subr.bf16.mxu0 %v1681
  %2310 = vmatpush1.bf16.msra.mxu0 %v1678
  %2311 = vmatprep.subr.bf16.mxu0 0
  %2312 = vmatpush1.bf16.msra.mxu0 0
  %2313 = vmatprep.subr.bf16.mxu0 0
  %2314 = vmatpush1.bf16.msra.mxu0 0
  %2315 = vmatprep.subr.bf16.mxu0 0
  %2316 = vmatpush1.bf16.msra.mxu0 0
  %2317 = vmatprep.subr.bf16.mxu0 0
  %2318 = vmatpush1.bf16.msra.mxu0 0
  %2319 = vmatprep.subr.bf16.mxu0 0
  %2320 = vmatpush1.bf16.msra.mxu0 0
  %2321 = vmatprep.subr.bf16.mxu0 0
  %2322 = vmatpush1.bf16.msra.mxu0 0
  %2323 = vmatprep.subr.bf16.mxu0 0
  %2324 = vmatpush1.bf16.msra.mxu0 0
  %2325 = vmatprep.subr.bf16.mxu0 0
  %2326 = vmatpush1.bf16.msra.mxu0 0
  %2327 = vmatprep.subr.bf16.mxu0 0
  %2328 = vmatpush1.bf16.msra.mxu0 0
  %2329 = vmatprep.subr.bf16.mxu0 0
  %2330 = vmatpush1.bf16.msra.mxu0 0
  %2331 = vmatprep.subr.bf16.mxu0 0
  %2332 = vmatpush1.bf16.msra.mxu0 0
  %2333 = vmatprep.subr.bf16.mxu0 0
  %2334 = vmatpush1.bf16.msra.mxu0 0
  %2335 = vmatprep.subr.bf16.mxu0 0
  %2336 = vmatpush1.bf16.msra.mxu0 0
  %2337 = vmatprep.subr.bf16.mxu0 0
  %2338 = vmatpush1.bf16.msra.mxu0 0
  %2339 = vmatprep.subr.bf16.mxu0 0
  %2340 = vmatpush1.bf16.msra.mxu0 0
  %2341 = vmatprep.mubr.bf16.mxu0 0
  %2342 = vmatmul.mubr.bf16.gmra.mrb[0].mxu0 %v1617
  %v2343 = vpop.f32.mrb[0].mxu0
  %v2344 = vadd.f32 0.0, %v2343
  %v2345 = vpop.f32.mrb[0].mxu0
  %v2346 = vadd.f32 0.0, %v2345
  %v2347 = vpop.f32.mrb[0].mxu0
  %v2348 = vadd.f32 0.0, %v2347
  %v2349 = vpop.f32.mrb[0].mxu0
  %v2350 = vadd.f32 0.0, %v2349
  %2351 = vmatprep.mubr.bf16.mxu0 0
  %2352 = vmatmul.mubr.bf16.gmra.mrb[0].mxu0 %v1620
  %v2353 = vpop.f32.mrb[0].mxu0
  %v2354 = vadd.f32 0.0, %v2353
  %v2355 = vpop.f32.mrb[0].mxu0
  %v2356 = vadd.f32 0.0, %v2355
  %v2357 = vpop.f32.mrb[0].mxu0
  %v2358 = vadd.f32 0.0, %v2357
  %v2359 = vpop.f32.mrb[0].mxu0
  %v2360 = vadd.f32 0.0, %v2359
  %2361 = vmatprep.mubr.bf16.mxu0 0
  %2362 = vmatmul.mubr.bf16.gmra.mrb[0].mxu0 %v1623
  %v2363 = vpop.f32.mrb[0].mxu0
  %v2364 = vadd.f32 0.0, %v2363
  %v2365 = vpop.f32.mrb[0].mxu0
  %v2366 = vadd.f32 0.0, %v2365
  %v2367 = vpop.f32.mrb[0].mxu0
  %v2368 = vadd.f32 0.0, %v2367
  %v2369 = vpop.f32.mrb[0].mxu0
  %v2370 = vadd.f32 0.0, %v2369
  %2371 = vmatprep.mubr.bf16.mxu0 0
  %2372 = vmatmul.mubr.bf16.gmra.mrb[0].mxu0 %v1626
  %v2373 = vpop.f32.mrb[0].mxu0
  %v2374 = vadd.f32 0.0, %v2373
  %v2375 = vpop.f32.mrb[0].mxu0
  %v2376 = vadd.f32 0.0, %v2375
  %v2377 = vpop.f32.mrb[0].mxu0
  %v2378 = vadd.f32 0.0, %v2377
  %v2379 = vpop.f32.mrb[0].mxu0
  %v2380 = vadd.f32 0.0, %v2379
  %2381 = vdwg.mxu0
  %2382 = vmatprep.subr.bf16.mxu0 %v1687
  %2383 = vmatpush1.bf16.msra.mxu0 %v1684
  %2384 = vmatprep.subr.bf16.mxu0 0
  %2385 = vmatpush1.bf16.msra.mxu0 0
  %2386 = vmatprep.subr.bf16.mxu0 0
  %2387 = vmatpush1.bf16.msra.mxu0 0
  %2388 = vmatprep.subr.bf16.mxu0 0
  %2389 = vmatpush1.bf16.msra.mxu0 0
  %2390 = vmatprep.subr.bf16.mxu0 0
  %2391 = vmatpush1.bf16.msra.mxu0 0
  %2392 = vmatprep.subr.bf16.mxu0 0
  %2393 = vmatpush1.bf16.msra.mxu0 0
  %2394 = vmatprep.subr.bf16.mxu0 0
  %2395 = vmatpush1.bf16.msra.mxu0 0
  %2396 = vmatprep.subr.bf16.mxu0 0
  %2397 = vmatpush1.bf16.msra.mxu0 0
  %2398 = vmatprep.subr.bf16.mxu0 0
  %2399 = vmatpush1.bf16.msra.mxu0 0
  %2400 = vmatprep.subr.bf16.mxu0 0
  %2401 = vmatpush1.bf16.msra.mxu0 0
  %2402 = vmatprep.subr.bf16.mxu0 0
  %2403 = vmatpush1.bf16.msra.mxu0 0
  %2404 = vmatprep.subr.bf16.mxu0 0
  %2405 = vmatpush1.bf16.msra.mxu0 0
  %2406 = vmatprep.subr.bf16.mxu0 0
  %2407 = vmatpush1.bf16.msra.mxu0 0
  %2408 = vmatprep.subr.bf16.mxu0 0
  %2409 = vmatpush1.bf16.msra.mxu0 0
  %2410 = vmatprep.subr.bf16.mxu0 0
  %2411 = vmatpush1.bf16.msra.mxu0 0
  %2412 = vmatprep.subr.bf16.mxu0 0
  %2413 = vmatpush1.bf16.msra.mxu0 0
  %2414 = vmatprep.mubr.bf16.mxu0 0
  %2415 = vmatmul.mubr.bf16.gmra.mrb[0].mxu0 %v1617
  %v2416 = vpop.f32.mrb[0].mxu0
  %v2417 = vadd.f32 0.0, %v2416
  %v2418 = vpop.f32.mrb[0].mxu0
  %v2419 = vadd.f32 0.0, %v2418
  %v2420 = vpop.f32.mrb[0].mxu0
  %v2421 = vadd.f32 0.0, %v2420
  %v2422 = vpop.f32.mrb[0].mxu0
  %v2423 = vadd.f32 0.0, %v2422
  %2424 = vmatprep.mubr.bf16.mxu0 0
  %2425 = vmatmul.mubr.bf16.gmra.mrb[0].mxu0 %v1620
  %v2426 = vpop.f32.mrb[0].mxu0
  %v2427 = vadd.f32 0.0, %v2426
  %v2428 = vpop.f32.mrb[0].mxu0
  %v2429 = vadd.f32 0.0, %v2428
  %v2430 = vpop.f32.mrb[0].mxu0
  %v2431 = vadd.f32 0.0, %v2430
  %v2432 = vpop.f32.mrb[0].mxu0
  %v2433 = vadd.f32 0.0, %v2432
  %2434 = vmatprep.mubr.bf16.mxu0 0
  %2435 = vmatmul.mubr.bf16.gmra.mrb[0].mxu0 %v1623
  %v2436 = vpop.f32.mrb[0].mxu0
  %v2437 = vadd.f32 0.0, %v2436
  %v2438 = vpop.f32.mrb[0].mxu0
  %v2439 = vadd.f32 0.0, %v2438
  %v2440 = vpop.f32.mrb[0].mxu0
  %v2441 = vadd.f32 0.0, %v2440
  %v2442 = vpop.f32.mrb[0].mxu0
  %v2443 = vadd.f32 0.0, %v2442
  %2444 = vmatprep.mubr.bf16.mxu0 0
  %2445 = vmatmul.mubr.bf16.gmra.mrb[0].mxu0 %v1626
  %v2446 = vpop.f32.mrb[0].mxu0
  %v2447 = vadd.f32 0.0, %v2446
  %v2448 = vpop.f32.mrb[0].mxu0
  %v2449 = vadd.f32 0.0, %v2448
  %v2450 = vpop.f32.mrb[0].mxu0
  %v2451 = vadd.f32 0.0, %v2450
  %v2452 = vpop.f32.mrb[0].mxu0
  %v2453 = vadd.f32 0.0, %v2452
  %2454 = vdwg.mxu0
  %2455 = vmatprep.subr.bf16.mxu0 %v1693
  %2456 = vmatpush1.bf16.msra.mxu0 %v1690
  %2457 = vmatprep.subr.bf16.mxu0 0
  %2458 = vmatpush1.bf16.msra.mxu0 0
  %2459 = vmatprep.subr.bf16.mxu0 0
  %2460 = vmatpush1.bf16.msra.mxu0 0
  %2461 = vmatprep.subr.bf16.mxu0 0
  %2462 = vmatpush1.bf16.msra.mxu0 0
  %2463 = vmatprep.subr.bf16.mxu0 0
  %2464 = vmatpush1.bf16.msra.mxu0 0
  %2465 = vmatprep.subr.bf16.mxu0 0
  %2466 = vmatpush1.bf16.msra.mxu0 0
  %2467 = vmatprep.subr.bf16.mxu0 0
  %2468 = vmatpush1.bf16.msra.mxu0 0
  %2469 = vmatprep.subr.bf16.mxu0 0
  %2470 = vmatpush1.bf16.msra.mxu0 0
  %2471 = vmatprep.subr.bf16.mxu0 0
  %2472 = vmatpush1.bf16.msra.mxu0 0
  %2473 = vmatprep.subr.bf16.mxu0 0
  %2474 = vmatpush1.bf16.msra.mxu0 0
  %2475 = vmatprep.subr.bf16.mxu0 0
  %2476 = vmatpush1.bf16.msra.mxu0 0
  %2477 = vmatprep.subr.bf16.mxu0 0
  %2478 = vmatpush1.bf16.msra.mxu0 0
  %2479 = vmatprep.subr.bf16.mxu0 0
  %2480 = vmatpush1.bf16.msra.mxu0 0
  %2481 = vmatprep.subr.bf16.mxu0 0
  %2482 = vmatpush1.bf16.msra.mxu0 0
  %2483 = vmatprep.subr.bf16.mxu0 0
  %2484 = vmatpush1.bf16.msra.mxu0 0
  %2485 = vmatprep.subr.bf16.mxu0 0
  %2486 = vmatpush1.bf16.msra.mxu0 0
  %2487 = vmatprep.mubr.bf16.mxu0 0
  %2488 = vmatmul.mubr.bf16.gmra.mrb[0].mxu0 %v1617
  %v2489 = vpop.f32.mrb[0].mxu0
  %v2490 = vadd.f32 0.0, %v2489
  %v2491 = vpop.f32.mrb[0].mxu0
  %v2492 = vadd.f32 0.0, %v2491
  %v2493 = vpop.f32.mrb[0].mxu0
  %v2494 = vadd.f32 0.0, %v2493
  %v2495 = vpop.f32.mrb[0].mxu0
  %v2496 = vadd.f32 0.0, %v2495
  %2497 = vmatprep.mubr.bf16.mxu0 0
  %2498 = vmatmul.mubr.bf16.gmra.mrb[0].mxu0 %v1620
  %v2499 = vpop.f32.mrb[0].mxu0
  %v2500 = vadd.f32 0.0, %v2499
  %v2501 = vpop.f32.mrb[0].mxu0
  %v2502 = vadd.f32 0.0, %v2501
  %v2503 = vpop.f32.mrb[0].mxu0
  %v2504 = vadd.f32 0.0, %v2503
  %v2505 = vpop.f32.mrb[0].mxu0
  %v2506 = vadd.f32 0.0, %v2505
  %2507 = vmatprep.mubr.bf16.mxu0 0
  %2508 = vmatmul.mubr.bf16.gmra.mrb[0].mxu0 %v1623
  %v2509 = vpop.f32.mrb[0].mxu0
  %v2510 = vadd.f32 0.0, %v2509
  %v2511 = vpop.f32.mrb[0].mxu0
  %v2512 = vadd.f32 0.0, %v2511
  %v2513 = vpop.f32.mrb[0].mxu0
  %v2514 = vadd.f32 0.0, %v2513
  %v2515 = vpop.f32.mrb[0].mxu0
  %v2516 = vadd.f32 0.0, %v2515
  %2517 = vmatprep.mubr.bf16.mxu0 0
  %2518 = vmatmul.mubr.bf16.gmra.mrb[0].mxu0 %v1626
  %v2519 = vpop.f32.mrb[0].mxu0
  %v2520 = vadd.f32 0.0, %v2519
  %v2521 = vpop.f32.mrb[0].mxu0
  %v2522 = vadd.f32 0.0, %v2521
  %v2523 = vpop.f32.mrb[0].mxu0
  %v2524 = vadd.f32 0.0, %v2523
  %v2525 = vpop.f32.mrb[0].mxu0
  %v2526 = vadd.f32 0.0, %v2525
  %2527 = vdwg.mxu0
  %2528 = vmatprep.subr.bf16.mxu0 %v1699
  %2529 = vmatpush1.bf16.msra.mxu0 %v1696
  %2530 = vmatprep.subr.bf16.mxu0 0
  %2531 = vmatpush1.bf16.msra.mxu0 0
  %2532 = vmatprep.subr.bf16.mxu0 0
  %2533 = vmatpush1.bf16.msra.mxu0 0
  %2534 = vmatprep.subr.bf16.mxu0 0
  %2535 = vmatpush1.bf16.msra.mxu0 0
  %2536 = vmatprep.subr.bf16.mxu0 0
  %2537 = vmatpush1.bf16.msra.mxu0 0
  %2538 = vmatprep.subr.bf16.mxu0 0
  %2539 = vmatpush1.bf16.msra.mxu0 0
  %2540 = vmatprep.subr.bf16.mxu0 0
  %2541 = vmatpush1.bf16.msra.mxu0 0
  %2542 = vmatprep.subr.bf16.mxu0 0
  %2543 = vmatpush1.bf16.msra.mxu0 0
  %2544 = vmatprep.subr.bf16.mxu0 0
  %2545 = vmatpush1.bf16.msra.mxu0 0
  %2546 = vmatprep.subr.bf16.mxu0 0
  %2547 = vmatpush1.bf16.msra.mxu0 0
  %2548 = vmatprep.subr.bf16.mxu0 0
  %2549 = vmatpush1.bf16.msra.mxu0 0
  %2550 = vmatprep.subr.bf16.mxu0 0
  %2551 = vmatpush1.bf16.msra.mxu0 0
  %2552 = vmatprep.subr.bf16.mxu0 0
  %2553 = vmatpush1.bf16.msra.mxu0 0
  %2554 = vmatprep.subr.bf16.mxu0 0
  %2555 = vmatpush1.bf16.msra.mxu0 0
  %2556 = vmatprep.subr.bf16.mxu0 0
  %2557 = vmatpush1.bf16.msra.mxu0 0
  %2558 = vmatprep.subr.bf16.mxu0 0
  %2559 = vmatpush1.bf16.msra.mxu0 0
  %2560 = vmatprep.mubr.bf16.mxu0 0
  %2561 = vmatmul.mubr.bf16.gmra.mrb[0].mxu0 %v1617
  %v2562 = vpop.f32.mrb[0].mxu0
  %v2563 = vadd.f32 0.0, %v2562
  %v2564 = vpop.f32.mrb[0].mxu0
  %v2565 = vadd.f32 0.0, %v2564
  %v2566 = vpop.f32.mrb[0].mxu0
  %v2567 = vadd.f32 0.0, %v2566
  %v2568 = vpop.f32.mrb[0].mxu0
  %v2569 = vadd.f32 0.0, %v2568
  %2570 = vmatprep.mubr.bf16.mxu0 0
  %2571 = vmatmul.mubr.bf16.gmra.mrb[0].mxu0 %v1620
  %v2572 = vpop.f32.mrb[0].mxu0
  %v2573 = vadd.f32 0.0, %v2572
  %v2574 = vpop.f32.mrb[0].mxu0
  %v2575 = vadd.f32 0.0, %v2574
  %v2576 = vpop.f32.mrb[0].mxu0
  %v2577 = vadd.f32 0.0, %v2576
  %v2578 = vpop.f32.mrb[0].mxu0
  %v2579 = vadd.f32 0.0, %v2578
  %2580 = vmatprep.mubr.bf16.mxu0 0
  %2581 = vmatmul.mubr.bf16.gmra.mrb[0].mxu0 %v1623
  %v2582 = vpop.f32.mrb[0].mxu0
  %v2583 = vadd.f32 0.0, %v2582
  %v2584 = vpop.f32.mrb[0].mxu0
  %v2585 = vadd.f32 0.0, %v2584
  %v2586 = vpop.f32.mrb[0].mxu0
  %v2587 = vadd.f32 0.0, %v2586
  %v2588 = vpop.f32.mrb[0].mxu0
  %v2589 = vadd.f32 0.0, %v2588
  %2590 = vmatprep.mubr.bf16.mxu0 0
  %2591 = vmatmul.mubr.bf16.gmra.mrb[0].mxu0 %v1626
  %v2592 = vpop.f32.mrb[0].mxu0
  %v2593 = vadd.f32 0.0, %v2592
  %v2594 = vpop.f32.mrb[0].mxu0
  %v2595 = vadd.f32 0.0, %v2594
  %v2596 = vpop.f32.mrb[0].mxu0
  %v2597 = vadd.f32 0.0, %v2596
  %v2598 = vpop.f32.mrb[0].mxu0
  %v2599 = vadd.f32 0.0, %v2598
  %2600 = vdwg.mxu0
  %2601 = vmatprep.subr.bf16.mxu0 %v1705
  %2602 = vmatpush1.bf16.msra.mxu0 %v1702
  %2603 = vmatprep.subr.bf16.mxu0 0
  %2604 = vmatpush1.bf16.msra.mxu0 0
  %2605 = vmatprep.subr.bf16.mxu0 0
  %2606 = vmatpush1.bf16.msra.mxu0 0
  %2607 = vmatprep.subr.bf16.mxu0 0
  %2608 = vmatpush1.bf16.msra.mxu0 0
  %2609 = vmatprep.subr.bf16.mxu0 0
  %2610 = vmatpush1.bf16.msra.mxu0 0
  %2611 = vmatprep.subr.bf16.mxu0 0
  %2612 = vmatpush1.bf16.msra.mxu0 0
  %2613 = vmatprep.subr.bf16.mxu0 0
  %2614 = vmatpush1.bf16.msra.mxu0 0
  %2615 = vmatprep.subr.bf16.mxu0 0
  %2616 = vmatpush1.bf16.msra.mxu0 0
  %2617 = vmatprep.subr.bf16.mxu0 0
  %2618 = vmatpush1.bf16.msra.mxu0 0
  %2619 = vmatprep.subr.bf16.mxu0 0
  %2620 = vmatpush1.bf16.msra.mxu0 0
  %2621 = vmatprep.subr.bf16.mxu0 0
  %2622 = vmatpush1.bf16.msra.mxu0 0
  %2623 = vmatprep.subr.bf16.mxu0 0
  %2624 = vmatpush1.bf16.msra.mxu0 0
  %2625 = vmatprep.subr.bf16.mxu0 0
  %2626 = vmatpush1.bf16.msra.mxu0 0
  %2627 = vmatprep.subr.bf16.mxu0 0
  %2628 = vmatpush1.bf16.msra.mxu0 0
  %2629 = vmatprep.subr.bf16.mxu0 0
  %2630 = vmatpush1.bf16.msra.mxu0 0
  %2631 = vmatprep.subr.bf16.mxu0 0
  %2632 = vmatpush1.bf16.msra.mxu0 0
  %2633 = vmatprep.mubr.bf16.mxu0 0
  %2634 = vmatmul.mubr.bf16.gmra.mrb[0].mxu0 %v1617
  %v2635 = vpop.f32.mrb[0].mxu0
  %v2636 = vadd.f32 0.0, %v2635
  %v2637 = vpop.f32.mrb[0].mxu0
  %v2638 = vadd.f32 0.0, %v2637
  %v2639 = vpop.f32.mrb[0].mxu0
  %v2640 = vadd.f32 0.0, %v2639
  %v2641 = vpop.f32.mrb[0].mxu0
  %v2642 = vadd.f32 0.0, %v2641
  %2643 = vmatprep.mubr.bf16.mxu0 0
  %2644 = vmatmul.mubr.bf16.gmra.mrb[0].mxu0 %v1620
  %v2645 = vpop.f32.mrb[0].mxu0
  %v2646 = vadd.f32 0.0, %v2645
  %v2647 = vpop.f32.mrb[0].mxu0
  %v2648 = vadd.f32 0.0, %v2647
  %v2649 = vpop.f32.mrb[0].mxu0
  %v2650 = vadd.f32 0.0, %v2649
  %v2651 = vpop.f32.mrb[0].mxu0
  %v2652 = vadd.f32 0.0, %v2651
  %2653 = vmatprep.mubr.bf16.mxu0 0
  %2654 = vmatmul.mubr.bf16.gmra.mrb[0].mxu0 %v1623
  %v2655 = vpop.f32.mrb[0].mxu0
  %v2656 = vadd.f32 0.0, %v2655
  %v2657 = vpop.f32.mrb[0].mxu0
  %v2658 = vadd.f32 0.0, %v2657
  %v2659 = vpop.f32.mrb[0].mxu0
  %v2660 = vadd.f32 0.0, %v2659
  %v2661 = vpop.f32.mrb[0].mxu0
  %v2662 = vadd.f32 0.0, %v2661
  %2663 = vmatprep.mubr.bf16.mxu0 0
  %2664 = vmatmul.mubr.bf16.gmra.mrb[0].mxu0 %v1626
  %v2665 = vpop.f32.mrb[0].mxu0
  %v2666 = vadd.f32 0.0, %v2665
  %v2667 = vpop.f32.mrb[0].mxu0
  %v2668 = vadd.f32 0.0, %v2667
  %v2669 = vpop.f32.mrb[0].mxu0
  %v2670 = vadd.f32 0.0, %v2669
  %v2671 = vpop.f32.mrb[0].mxu0
  %v2672 = vadd.f32 0.0, %v2671
  %2673 = vdwg.mxu0
  %2674 = vmatprep.subr.bf16.mxu0 %v1711
  %2675 = vmatpush1.bf16.msra.mxu0 %v1708
  %2676 = vmatprep.subr.bf16.mxu0 0
  %2677 = vmatpush1.bf16.msra.mxu0 0
  %2678 = vmatprep.subr.bf16.mxu0 0
  %2679 = vmatpush1.bf16.msra.mxu0 0
  %2680 = vmatprep.subr.bf16.mxu0 0
  %2681 = vmatpush1.bf16.msra.mxu0 0
  %2682 = vmatprep.subr.bf16.mxu0 0
  %2683 = vmatpush1.bf16.msra.mxu0 0
  %2684 = vmatprep.subr.bf16.mxu0 0
  %2685 = vmatpush1.bf16.msra.mxu0 0
  %2686 = vmatprep.subr.bf16.mxu0 0
  %2687 = vmatpush1.bf16.msra.mxu0 0
  %2688 = vmatprep.subr.bf16.mxu0 0
  %2689 = vmatpush1.bf16.msra.mxu0 0
  %2690 = vmatprep.subr.bf16.mxu0 0
  %2691 = vmatpush1.bf16.msra.mxu0 0
  %2692 = vmatprep.subr.bf16.mxu0 0
  %2693 = vmatpush1.bf16.msra.mxu0 0
  %2694 = vmatprep.subr.bf16.mxu0 0
  %2695 = vmatpush1.bf16.msra.mxu0 0
  %2696 = vmatprep.subr.bf16.mxu0 0
  %2697 = vmatpush1.bf16.msra.mxu0 0
  %2698 = vmatprep.subr.bf16.mxu0 0
  %2699 = vmatpush1.bf16.msra.mxu0 0
  %2700 = vmatprep.subr.bf16.mxu0 0
  %2701 = vmatpush1.bf16.msra.mxu0 0
  %2702 = vmatprep.subr.bf16.mxu0 0
  %2703 = vmatpush1.bf16.msra.mxu0 0
  %2704 = vmatprep.subr.bf16.mxu0 0
  %2705 = vmatpush1.bf16.msra.mxu0 0
  %2706 = vmatprep.mubr.bf16.mxu0 0
  %2707 = vmatmul.mubr.bf16.gmra.mrb[0].mxu0 %v1617
  %v2708 = vpop.f32.mrb[0].mxu0
  %v2709 = vadd.f32 0.0, %v2708
  %v2710 = vpop.f32.mrb[0].mxu0
  %v2711 = vadd.f32 0.0, %v2710
  %v2712 = vpop.f32.mrb[0].mxu0
  %v2713 = vadd.f32 0.0, %v2712
  %v2714 = vpop.f32.mrb[0].mxu0
  %v2715 = vadd.f32 0.0, %v2714
  %2716 = vmatprep.mubr.bf16.mxu0 0
  %2717 = vmatmul.mubr.bf16.gmra.mrb[0].mxu0 %v1620
  %v2718 = vpop.f32.mrb[0].mxu0
  %v2719 = vadd.f32 0.0, %v2718
  %v2720 = vpop.f32.mrb[0].mxu0
  %v2721 = vadd.f32 0.0, %v2720
  %v2722 = vpop.f32.mrb[0].mxu0
  %v2723 = vadd.f32 0.0, %v2722
  %v2724 = vpop.f32.mrb[0].mxu0
  %v2725 = vadd.f32 0.0, %v2724
  %2726 = vmatprep.mubr.bf16.mxu0 0
  %2727 = vmatmul.mubr.bf16.gmra.mrb[0].mxu0 %v1623
  %v2728 = vpop.f32.mrb[0].mxu0
  %v2729 = vadd.f32 0.0, %v2728
  %v2730 = vpop.f32.mrb[0].mxu0
  %v2731 = vadd.f32 0.0, %v2730
  %v2732 = vpop.f32.mrb[0].mxu0
  %v2733 = vadd.f32 0.0, %v2732
  %v2734 = vpop.f32.mrb[0].mxu0
  %v2735 = vadd.f32 0.0, %v2734
  %2736 = vmatprep.mubr.bf16.mxu0 0
  %2737 = vmatmul.mubr.bf16.gmra.mrb[0].mxu0 %v1626
  %v2738 = vpop.f32.mrb[0].mxu0
  %v2739 = vadd.f32 0.0, %v2738
  %v2740 = vpop.f32.mrb[0].mxu0
  %v2741 = vadd.f32 0.0, %v2740
  %v2742 = vpop.f32.mrb[0].mxu0
  %v2743 = vadd.f32 0.0, %v2742
  %v2744 = vpop.f32.mrb[0].mxu0
  %v2745 = vadd.f32 0.0, %v2744
  %2746 = vdwg.mxu0
  %2747 = vmatprep.subr.bf16.mxu0 %v1717
  %2748 = vmatpush1.bf16.msra.mxu0 %v1714
  %2749 = vmatprep.subr.bf16.mxu0 0
  %2750 = vmatpush1.bf16.msra.mxu0 0
  %2751 = vmatprep.subr.bf16.mxu0 0
  %2752 = vmatpush1.bf16.msra.mxu0 0
  %2753 = vmatprep.subr.bf16.mxu0 0
  %2754 = vmatpush1.bf16.msra.mxu0 0
  %2755 = vmatprep.subr.bf16.mxu0 0
  %2756 = vmatpush1.bf16.msra.mxu0 0
  %2757 = vmatprep.subr.bf16.mxu0 0
  %2758 = vmatpush1.bf16.msra.mxu0 0
  %2759 = vmatprep.subr.bf16.mxu0 0
  %2760 = vmatpush1.bf16.msra.mxu0 0
  %2761 = vmatprep.subr.bf16.mxu0 0
  %2762 = vmatpush1.bf16.msra.mxu0 0
  %2763 = vmatprep.subr.bf16.mxu0 0
  %2764 = vmatpush1.bf16.msra.mxu0 0
  %2765 = vmatprep.subr.bf16.mxu0 0
  %2766 = vmatpush1.bf16.msra.mxu0 0
  %2767 = vmatprep.subr.bf16.mxu0 0
  %2768 = vmatpush1.bf16.msra.mxu0 0
  %2769 = vmatprep.subr.bf16.mxu0 0
  %2770 = vmatpush1.bf16.msra.mxu0 0
  %2771 = vmatprep.subr.bf16.mxu0 0
  %2772 = vmatpush1.bf16.msra.mxu0 0
  %2773 = vmatprep.subr.bf16.mxu0 0
  %2774 = vmatpush1.bf16.msra.mxu0 0
  %2775 = vmatprep.subr.bf16.mxu0 0
  %2776 = vmatpush1.bf16.msra.mxu0 0
  %2777 = vmatprep.subr.bf16.mxu0 0
  %2778 = vmatpush1.bf16.msra.mxu0 0
  %2779 = vmatprep.mubr.bf16.mxu0 0
  %2780 = vmatmul.mubr.bf16.gmra.mrb[0].mxu0 %v1617
  %v2781 = vpop.f32.mrb[0].mxu0
  %v2782 = vadd.f32 0.0, %v2781
  %v2783 = vpop.f32.mrb[0].mxu0
  %v2784 = vadd.f32 0.0, %v2783
  %v2785 = vpop.f32.mrb[0].mxu0
  %v2786 = vadd.f32 0.0, %v2785
  %v2787 = vpop.f32.mrb[0].mxu0
  %v2788 = vadd.f32 0.0, %v2787
  %2789 = vmatprep.mubr.bf16.mxu0 0
  %2790 = vmatmul.mubr.bf16.gmra.mrb[0].mxu0 %v1620
  %v2791 = vpop.f32.mrb[0].mxu0
  %v2792 = vadd.f32 0.0, %v2791
  %v2793 = vpop.f32.mrb[0].mxu0
  %v2794 = vadd.f32 0.0, %v2793
  %v2795 = vpop.f32.mrb[0].mxu0
  %v2796 = vadd.f32 0.0, %v2795
  %v2797 = vpop.f32.mrb[0].mxu0
  %v2798 = vadd.f32 0.0, %v2797
  %2799 = vmatprep.mubr.bf16.mxu0 0
  %2800 = vmatmul.mubr.bf16.gmra.mrb[0].mxu0 %v1623
  %v2801 = vpop.f32.mrb[0].mxu0
  %v2802 = vadd.f32 0.0, %v2801
  %v2803 = vpop.f32.mrb[0].mxu0
  %v2804 = vadd.f32 0.0, %v2803
  %v2805 = vpop.f32.mrb[0].mxu0
  %v2806 = vadd.f32 0.0, %v2805
  %v2807 = vpop.f32.mrb[0].mxu0
  %v2808 = vadd.f32 0.0, %v2807
  %2809 = vmatprep.mubr.bf16.mxu0 0
  %2810 = vmatmul.mubr.bf16.gmra.mrb[0].mxu0 %v1626
  %v2811 = vpop.f32.mrb[0].mxu0
  %v2812 = vadd.f32 0.0, %v2811
  %v2813 = vpop.f32.mrb[0].mxu0
  %v2814 = vadd.f32 0.0, %v2813
  %v2815 = vpop.f32.mrb[0].mxu0
  %v2816 = vadd.f32 0.0, %v2815
  %v2817 = vpop.f32.mrb[0].mxu0
  %v2818 = vadd.f32 0.0, %v2817
  %2819 = vdwg.mxu0
  %2820 = vmatprep.subr.bf16.mxu0 %v1723
  %2821 = vmatpush1.bf16.msra.mxu0 %v1720
  %2822 = vmatprep.subr.bf16.mxu0 0
  %2823 = vmatpush1.bf16.msra.mxu0 0
  %2824 = vmatprep.subr.bf16.mxu0 0
  %2825 = vmatpush1.bf16.msra.mxu0 0
  %2826 = vmatprep.subr.bf16.mxu0 0
  %2827 = vmatpush1.bf16.msra.mxu0 0
  %2828 = vmatprep.subr.bf16.mxu0 0
  %2829 = vmatpush1.bf16.msra.mxu0 0
  %2830 = vmatprep.subr.bf16.mxu0 0
  %2831 = vmatpush1.bf16.msra.mxu0 0
  %2832 = vmatprep.subr.bf16.mxu0 0
  %2833 = vmatpush1.bf16.msra.mxu0 0
  %2834 = vmatprep.subr.bf16.mxu0 0
  %2835 = vmatpush1.bf16.msra.mxu0 0
  %2836 = vmatprep.subr.bf16.mxu0 0
  %2837 = vmatpush1.bf16.msra.mxu0 0
  %2838 = vmatprep.subr.bf16.mxu0 0
  %2839 = vmatpush1.bf16.msra.mxu0 0
  %2840 = vmatprep.subr.bf16.mxu0 0
  %2841 = vmatpush1.bf16.msra.mxu0 0
  %2842 = vmatprep.subr.bf16.mxu0 0
  %2843 = vmatpush1.bf16.msra.mxu0 0
  %2844 = vmatprep.subr.bf16.mxu0 0
  %2845 = vmatpush1.bf16.msra.mxu0 0
  %2846 = vmatprep.subr.bf16.mxu0 0
  %2847 = vmatpush1.bf16.msra.mxu0 0
  %2848 = vmatprep.subr.bf16.mxu0 0
  %2849 = vmatpush1.bf16.msra.mxu0 0
  %2850 = vmatprep.subr.bf16.mxu0 0
  %2851 = vmatpush1.bf16.msra.mxu0 0
  %2852 = vmatprep.mubr.bf16.mxu0 0
  %2853 = vmatmul.mubr.bf16.gmra.mrb[0].mxu0 %v1617
  %v2854 = vpop.f32.mrb[0].mxu0
  %v2855 = vadd.f32 0.0, %v2854
  %v2856 = vpop.f32.mrb[0].mxu0
  %v2857 = vadd.f32 0.0, %v2856
  %v2858 = vpop.f32.mrb[0].mxu0
  %v2859 = vadd.f32 0.0, %v2858
  %v2860 = vpop.f32.mrb[0].mxu0
  %v2861 = vadd.f32 0.0, %v2860
  %2862 = vmatprep.mubr.bf16.mxu0 0
  %2863 = vmatmul.mubr.bf16.gmra.mrb[0].mxu0 %v1620
  %v2864 = vpop.f32.mrb[0].mxu0
  %v2865 = vadd.f32 0.0, %v2864
  %v2866 = vpop.f32.mrb[0].mxu0
  %v2867 = vadd.f32 0.0, %v2866
  %v2868 = vpop.f32.mrb[0].mxu0
  %v2869 = vadd.f32 0.0, %v2868
  %v2870 = vpop.f32.mrb[0].mxu0
  %v2871 = vadd.f32 0.0, %v2870
  %2872 = vmatprep.mubr.bf16.mxu0 0
  %2873 = vmatmul.mubr.bf16.gmra.mrb[0].mxu0 %v1623
  %v2874 = vpop.f32.mrb[0].mxu0
  %v2875 = vadd.f32 0.0, %v2874
  %v2876 = vpop.f32.mrb[0].mxu0
  %v2877 = vadd.f32 0.0, %v2876
  %v2878 = vpop.f32.mrb[0].mxu0
  %v2879 = vadd.f32 0.0, %v2878
  %v2880 = vpop.f32.mrb[0].mxu0
  %v2881 = vadd.f32 0.0, %v2880
  %2882 = vmatprep.mubr.bf16.mxu0 0
  %2883 = vmatmul.mubr.bf16.gmra.mrb[0].mxu0 %v1626
  %v2884 = vpop.f32.mrb[0].mxu0
  %v2885 = vadd.f32 0.0, %v2884
  %v2886 = vpop.f32.mrb[0].mxu0
  %v2887 = vadd.f32 0.0, %v2886
  %v2888 = vpop.f32.mrb[0].mxu0
  %v2889 = vadd.f32 0.0, %v2888
  %v2890 = vpop.f32.mrb[0].mxu0
  %v2891 = vadd.f32 0.0, %v2890
  %2892 = vdwg.mxu0
  %2893 = vst [vmem:[%s5] sm:$0xff] %v1760
  %2894 = vst [vmem:[%s5 + $0x8] sm:$0xff] %v1762
  %2895 = vst [vmem:[%s5 + $0x10] sm:$0xff] %v1833
  %2896 = vst [vmem:[%s5 + $0x18] sm:$0xff] %v1835
  %2897 = vst [vmem:[%s5 + $0x20] sm:$0xff] %v1906
  %2898 = vst [vmem:[%s5 + $0x28] sm:$0xff] %v1908
  %2899 = vst [vmem:[%s5 + $0x30] sm:$0xff] %v1979
  %2900 = vst [vmem:[%s5 + $0x38] sm:$0xff] %v1981
  %2901 = vst [vmem:[%s5 + $0x40] sm:$0xff] %v2052
  %2902 = vst [vmem:[%s5 + $0x48] sm:$0xff] %v2054
  %2903 = vst [vmem:[%s5 + $0x50] sm:$0xff] %v2125
  %2904 = vst [vmem:[%s5 + $0x58] sm:$0xff] %v2127
  %2905 = vst [vmem:[%s5 + $0x60] sm:$0xff] %v2198
  %2906 = vst [vmem:[%s5 + $0x68] sm:$0xff] %v2200
  %2907 = vst [vmem:[%s5 + $0x70] sm:$0xff] %v2271
  %2908 = vst [vmem:[%s5 + $0x78] sm:$0xff] %v2273
  %2909 = vst [vmem:[%s5 + $0x80] sm:$0xff] %v2344
  %2910 = vst [vmem:[%s5 + $0x88] sm:$0xff] %v2346
  %2911 = vst [vmem:[%s5 + $0x90] sm:$0xff] %v2417
  %2912 = vst [vmem:[%s5 + $0x98] sm:$0xff] %v2419
  %2913 = vst [vmem:[%s5 + $0xa0] sm:$0xff] %v2490
  %2914 = vst [vmem:[%s5 + $0xa8] sm:$0xff] %v2492
  %2915 = vst [vmem:[%s5 + $0xb0] sm:$0xff] %v2563
  %2916 = vst [vmem:[%s5 + $0xb8] sm:$0xff] %v2565
  %2917 = vst [vmem:[%s5 + $0xc0] sm:$0xff] %v2636
  %2918 = vst [vmem:[%s5 + $0xc8] sm:$0xff] %v2638
  %2919 = vst [vmem:[%s5 + $0xd0] sm:$0xff] %v2709
  %2920 = vst [vmem:[%s5 + $0xd8] sm:$0xff] %v2711
  %2921 = vst [vmem:[%s5 + $0xe0] sm:$0xff] %v2782
  %2922 = vst [vmem:[%s5 + $0xe8] sm:$0xff] %v2784
  %2923 = vst [vmem:[%s5 + $0xf0] sm:$0xff] %v2855
  %2924 = vst [vmem:[%s5 + $0xf8] sm:$0xff] %v2857
  %2925 = vst [vmem:[%s5 + $0x100] sm:$0xff] %v1764
  %2926 = vst [vmem:[%s5 + $0x108] sm:$0xff] %v1766
  %2927 = vst [vmem:[%s5 + $0x110] sm:$0xff] %v1837
  %2928 = vst [vmem:[%s5 + $0x118] sm:$0xff] %v1839
  %2929 = vst [vmem:[%s5 + $0x120] sm:$0xff] %v1910
  %2930 = vst [vmem:[%s5 + $0x128] sm:$0xff] %v1912
  %2931 = vst [vmem:[%s5 + $0x130] sm:$0xff] %v1983
  %2932 = vst [vmem:[%s5 + $0x138] sm:$0xff] %v1985
  %2933 = vst [vmem:[%s5 + $0x140] sm:$0xff] %v2056
  %2934 = vst [vmem:[%s5 + $0x148] sm:$0xff] %v2058
  %2935 = vst [vmem:[%s5 + $0x150] sm:$0xff] %v2129
  %2936 = vst [vmem:[%s5 + $0x158] sm:$0xff] %v2131
  %2937 = vst [vmem:[%s5 + $0x160] sm:$0xff] %v2202
  %2938 = vst [vmem:[%s5 + $0x168] sm:$0xff] %v2204
  %2939 = vst [vmem:[%s5 + $0x170] sm:$0xff] %v2275
  %2940 = vst [vmem:[%s5 + $0x178] sm:$0xff] %v2277
  %2941 = vst [vmem:[%s5 + $0x180] sm:$0xff] %v2348
  %2942 = vst [vmem:[%s5 + $0x188] sm:$0xff] %v2350
  %2943 = vst [vmem:[%s5 + $0x190] sm:$0xff] %v2421
  %2944 = vst [vmem:[%s5 + $0x198] sm:$0xff] %v2423
  %2945 = vst [vmem:[%s5 + $0x1a0] sm:$0xff] %v2494
  %2946 = vst [vmem:[%s5 + $0x1a8] sm:$0xff] %v2496
  %2947 = vst [vmem:[%s5 + $0x1b0] sm:$0xff] %v2567
  %2948 = vst [vmem:[%s5 + $0x1b8] sm:$0xff] %v2569
  %2949 = vst [vmem:[%s5 + $0x1c0] sm:$0xff] %v2640
  %2950 = vst [vmem:[%s5 + $0x1c8] sm:$0xff] %v2642
  %2951 = vst [vmem:[%s5 + $0x1d0] sm:$0xff] %v2713
  %2952 = vst [vmem:[%s5 + $0x1d8] sm:$0xff] %v2715
  %2953 = vst [vmem:[%s5 + $0x1e0] sm:$0xff] %v2786
  %2954 = vst [vmem:[%s5 + $0x1e8] sm:$0xff] %v2788
  %2955 = vst [vmem:[%s5 + $0x1f0] sm:$0xff] %v2859
  %2956 = vst [vmem:[%s5 + $0x1f8] sm:$0xff] %v2861
  %2957 = vst [vmem:[%s5 + $0x200] sm:$0xff] %v1770
  %2958 = vst [vmem:[%s5 + $0x208] sm:$0xff] %v1772
  %2959 = vst [vmem:[%s5 + $0x210] sm:$0xff] %v1843
  %2960 = vst [vmem:[%s5 + $0x218] sm:$0xff] %v1845
  %2961 = vst [vmem:[%s5 + $0x220] sm:$0xff] %v1916
  %2962 = vst [vmem:[%s5 + $0x228] sm:$0xff] %v1918
  %2963 = vst [vmem:[%s5 + $0x230] sm:$0xff] %v1989
  %2964 = vst [vmem:[%s5 + $0x238] sm:$0xff] %v1991
  %2965 = vst [vmem:[%s5 + $0x240] sm:$0xff] %v2062
  %2966 = vst [vmem:[%s5 + $0x248] sm:$0xff] %v2064
  %2967 = vst [vmem:[%s5 + $0x250] sm:$0xff] %v2135
  %2968 = vst [vmem:[%s5 + $0x258] sm:$0xff] %v2137
  %2969 = vst [vmem:[%s5 + $0x260] sm:$0xff] %v2208
  %2970 = vst [vmem:[%s5 + $0x268] sm:$0xff] %v2210
  %2971 = vst [vmem:[%s5 + $0x270] sm:$0xff] %v2281
  %2972 = vst [vmem:[%s5 + $0x278] sm:$0xff] %v2283
  %2973 = vst [vmem:[%s5 + $0x280] sm:$0xff] %v2354
  %2974 = vst [vmem:[%s5 + $0x288] sm:$0xff] %v2356
  %2975 = vst [vmem:[%s5 + $0x290] sm:$0xff] %v2427
  %2976 = vst [vmem:[%s5 + $0x298] sm:$0xff] %v2429
  %2977 = vst [vmem:[%s5 + $0x2a0] sm:$0xff] %v2500
  %2978 = vst [vmem:[%s5 + $0x2a8] sm:$0xff] %v2502
  %2979 = vst [vmem:[%s5 + $0x2b0] sm:$0xff] %v2573
  %2980 = vst [vmem:[%s5 + $0x2b8] sm:$0xff] %v2575
  %2981 = vst [vmem:[%s5 + $0x2c0] sm:$0xff] %v2646
  %2982 = vst [vmem:[%s5 + $0x2c8] sm:$0xff] %v2648
  %2983 = vst [vmem:[%s5 + $0x2d0] sm:$0xff] %v2719
  %2984 = vst [vmem:[%s5 + $0x2d8] sm:$0xff] %v2721
  %2985 = vst [vmem:[%s5 + $0x2e0] sm:$0xff] %v2792
  %2986 = vst [vmem:[%s5 + $0x2e8] sm:$0xff] %v2794
  %2987 = vst [vmem:[%s5 + $0x2f0] sm:$0xff] %v2865
  %2988 = vst [vmem:[%s5 + $0x2f8] sm:$0xff] %v2867
  %2989 = vst [vmem:[%s5 + $0x300] sm:$0xff] %v1774
  %2990 = vst [vmem:[%s5 + $0x308] sm:$0xff] %v1776
  %2991 = vst [vmem:[%s5 + $0x310] sm:$0xff] %v1847
  %2992 = vst [vmem:[%s5 + $0x318] sm:$0xff] %v1849
  %2993 = vst [vmem:[%s5 + $0x320] sm:$0xff] %v1920
  %2994 = vst [vmem:[%s5 + $0x328] sm:$0xff] %v1922
  %2995 = vst [vmem:[%s5 + $0x330] sm:$0xff] %v1993
  %2996 = vst [vmem:[%s5 + $0x338] sm:$0xff] %v1995
  %2997 = vst [vmem:[%s5 + $0x340] sm:$0xff] %v2066
  %2998 = vst [vmem:[%s5 + $0x348] sm:$0xff] %v2068
  %2999 = vst [vmem:[%s5 + $0x350] sm:$0xff] %v2139
  %3000 = vst [vmem:[%s5 + $0x358] sm:$0xff] %v2141
  %3001 = vst [vmem:[%s5 + $0x360] sm:$0xff] %v2212
  %3002 = vst [vmem:[%s5 + $0x368] sm:$0xff] %v2214
  %3003 = vst [vmem:[%s5 + $0x370] sm:$0xff] %v2285
  %3004 = vst [vmem:[%s5 + $0x378] sm:$0xff] %v2287
  %3005 = vst [vmem:[%s5 + $0x380] sm:$0xff] %v2358
  %3006 = vst [vmem:[%s5 + $0x388] sm:$0xff] %v2360
  %3007 = vst [vmem:[%s5 + $0x390] sm:$0xff] %v2431
  %3008 = vst [vmem:[%s5 + $0x398] sm:$0xff] %v2433
  %3009 = vst [vmem:[%s5 + $0x3a0] sm:$0xff] %v2504
  %3010 = vst [vmem:[%s5 + $0x3a8] sm:$0xff] %v2506
  %3011 = vst [vmem:[%s5 + $0x3b0] sm:$0xff] %v2577
  %3012 = vst [vmem:[%s5 + $0x3b8] sm:$0xff] %v2579
  %3013 = vst [vmem:[%s5 + $0x3c0] sm:$0xff] %v2650
  %3014 = vst [vmem:[%s5 + $0x3c8] sm:$0xff] %v2652
  %3015 = vst [vmem:[%s5 + $0x3d0] sm:$0xff] %v2723
  %3016 = vst [vmem:[%s5 + $0x3d8] sm:$0xff] %v2725
  %3017 = vst [vmem:[%s5 + $0x3e0] sm:$0xff] %v2796
  %3018 = vst [vmem:[%s5 + $0x3e8] sm:$0xff] %v2798
  %3019 = vst [vmem:[%s5 + $0x3f0] sm:$0xff] %v2869
  %3020 = vst [vmem:[%s5 + $0x3f8] sm:$0xff] %v2871
  %3021 = vst [vmem:[%s5 + $0x400] sm:$0xff] %v1780
  %3022 = vst [vmem:[%s5 + $0x408] sm:$0xff] %v1782
  %3023 = vst [vmem:[%s5 + $0x410] sm:$0xff] %v1853
  %3024 = vst [vmem:[%s5 + $0x418] sm:$0xff] %v1855
  %3025 = vst [vmem:[%s5 + $0x420] sm:$0xff] %v1926
  %3026 = vst [vmem:[%s5 + $0x428] sm:$0xff] %v1928
  %3027 = vst [vmem:[%s5 + $0x430] sm:$0xff] %v1999
  %3028 = vst [vmem:[%s5 + $0x438] sm:$0xff] %v2001
  %3029 = vst [vmem:[%s5 + $0x440] sm:$0xff] %v2072
  %3030 = vst [vmem:[%s5 + $0x448] sm:$0xff] %v2074
  %3031 = vst [vmem:[%s5 + $0x450] sm:$0xff] %v2145
  %3032 = vst [vmem:[%s5 + $0x458] sm:$0xff] %v2147
  %3033 = vst [vmem:[%s5 + $0x460] sm:$0xff] %v2218
  %3034 = vst [vmem:[%s5 + $0x468] sm:$0xff] %v2220
  %3035 = vst [vmem:[%s5 + $0x470] sm:$0xff] %v2291
  %3036 = vst [vmem:[%s5 + $0x478] sm:$0xff] %v2293
  %3037 = vst [vmem:[%s5 + $0x480] sm:$0xff] %v2364
  %3038 = vst [vmem:[%s5 + $0x488] sm:$0xff] %v2366
  %3039 = vst [vmem:[%s5 + $0x490] sm:$0xff] %v2437
  %3040 = vst [vmem:[%s5 + $0x498] sm:$0xff] %v2439
  %3041 = vst [vmem:[%s5 + $0x4a0] sm:$0xff] %v2510
  %3042 = vst [vmem:[%s5 + $0x4a8] sm:$0xff] %v2512
  %3043 = vst [vmem:[%s5 + $0x4b0] sm:$0xff] %v2583
  %3044 = vst [vmem:[%s5 + $0x4b8] sm:$0xff] %v2585
  %3045 = vst [vmem:[%s5 + $0x4c0] sm:$0xff] %v2656
  %3046 = vst [vmem:[%s5 + $0x4c8] sm:$0xff] %v2658
  %3047 = vst [vmem:[%s5 + $0x4d0] sm:$0xff] %v2729
  %3048 = vst [vmem:[%s5 + $0x4d8] sm:$0xff] %v2731
  %3049 = vst [vmem:[%s5 + $0x4e0] sm:$0xff] %v2802
  %3050 = vst [vmem:[%s5 + $0x4e8] sm:$0xff] %v2804
  %3051 = vst [vmem:[%s5 + $0x4f0] sm:$0xff] %v2875
  %3052 = vst [vmem:[%s5 + $0x4f8] sm:$0xff] %v2877
  %3053 = vst [vmem:[%s5 + $0x500] sm:$0xff] %v1784
  %3054 = vst [vmem:[%s5 + $0x508] sm:$0xff] %v1786
  %3055 = vst [vmem:[%s5 + $0x510] sm:$0xff] %v1857
  %3056 = vst [vmem:[%s5 + $0x518] sm:$0xff] %v1859
  %3057 = vst [vmem:[%s5 + $0x520] sm:$0xff] %v1930
  %3058 = vst [vmem:[%s5 + $0x528] sm:$0xff] %v1932
  %3059 = vst [vmem:[%s5 + $0x530] sm:$0xff] %v2003
  %3060 = vst [vmem:[%s5 + $0x538] sm:$0xff] %v2005
  %3061 = vst [vmem:[%s5 + $0x540] sm:$0xff] %v2076
  %3062 = vst [vmem:[%s5 + $0x548] sm:$0xff] %v2078
  %3063 = vst [vmem:[%s5 + $0x550] sm:$0xff] %v2149
  %3064 = vst [vmem:[%s5 + $0x558] sm:$0xff] %v2151
  %3065 = vst [vmem:[%s5 + $0x560] sm:$0xff] %v2222
  %3066 = vst [vmem:[%s5 + $0x568] sm:$0xff] %v2224
  %3067 = vst [vmem:[%s5 + $0x570] sm:$0xff] %v2295
  %3068 = vst [vmem:[%s5 + $0x578] sm:$0xff] %v2297
  %3069 = vst [vmem:[%s5 + $0x580] sm:$0xff] %v2368
  %3070 = vst [vmem:[%s5 + $0x588] sm:$0xff] %v2370
  %3071 = vst [vmem:[%s5 + $0x590] sm:$0xff] %v2441
  %3072 = vst [vmem:[%s5 + $0x598] sm:$0xff] %v2443
  %3073 = vst [vmem:[%s5 + $0x5a0] sm:$0xff] %v2514
  %3074 = vst [vmem:[%s5 + $0x5a8] sm:$0xff] %v2516
  %3075 = vst [vmem:[%s5 + $0x5b0] sm:$0xff] %v2587
  %3076 = vst [vmem:[%s5 + $0x5b8] sm:$0xff] %v2589
  %3077 = vst [vmem:[%s5 + $0x5c0] sm:$0xff] %v2660
  %3078 = vst [vmem:[%s5 + $0x5c8] sm:$0xff] %v2662
  %3079 = vst [vmem:[%s5 + $0x5d0] sm:$0xff] %v2733
  %3080 = vst [vmem:[%s5 + $0x5d8] sm:$0xff] %v2735
  %3081 = vst [vmem:[%s5 + $0x5e0] sm:$0xff] %v2806
  %3082 = vst [vmem:[%s5 + $0x5e8] sm:$0xff] %v2808
  %3083 = vst [vmem:[%s5 + $0x5f0] sm:$0xff] %v2879
  %3084 = vst [vmem:[%s5 + $0x5f8] sm:$0xff] %v2881
  %3085 = vst [vmem:[%s5 + $0x600] sm:$0xff] %v1790
  %3086 = vst [vmem:[%s5 + $0x608] sm:$0xff] %v1792
  %3087 = vst [vmem:[%s5 + $0x610] sm:$0xff] %v1863
  %3088 = vst [vmem:[%s5 + $0x618] sm:$0xff] %v1865
  %3089 = vst [vmem:[%s5 + $0x620] sm:$0xff] %v1936
  %3090 = vst [vmem:[%s5 + $0x628] sm:$0xff] %v1938
  %3091 = vst [vmem:[%s5 + $0x630] sm:$0xff] %v2009
  %3092 = vst [vmem:[%s5 + $0x638] sm:$0xff] %v2011
  %3093 = vst [vmem:[%s5 + $0x640] sm:$0xff] %v2082
  %3094 = vst [vmem:[%s5 + $0x648] sm:$0xff] %v2084
  %3095 = vst [vmem:[%s5 + $0x650] sm:$0xff] %v2155
  %3096 = vst [vmem:[%s5 + $0x658] sm:$0xff] %v2157
  %3097 = vst [vmem:[%s5 + $0x660] sm:$0xff] %v2228
  %3098 = vst [vmem:[%s5 + $0x668] sm:$0xff] %v2230
  %3099 = vst [vmem:[%s5 + $0x670] sm:$0xff] %v2301
  %3100 = vst [vmem:[%s5 + $0x678] sm:$0xff] %v2303
  %3101 = vst [vmem:[%s5 + $0x680] sm:$0xff] %v2374
  %3102 = vst [vmem:[%s5 + $0x688] sm:$0xff] %v2376
  %3103 = vst [vmem:[%s5 + $0x690] sm:$0xff] %v2447
  %3104 = vst [vmem:[%s5 + $0x698] sm:$0xff] %v2449
  %3105 = vst [vmem:[%s5 + $0x6a0] sm:$0xff] %v2520
  %3106 = vst [vmem:[%s5 + $0x6a8] sm:$0xff] %v2522
  %3107 = vst [vmem:[%s5 + $0x6b0] sm:$0xff] %v2593
  %3108 = vst [vmem:[%s5 + $0x6b8] sm:$0xff] %v2595
  %3109 = vst [vmem:[%s5 + $0x6c0] sm:$0xff] %v2666
  %3110 = vst [vmem:[%s5 + $0x6c8] sm:$0xff] %v2668
  %3111 = vst [vmem:[%s5 + $0x6d0] sm:$0xff] %v2739
  %3112 = vst [vmem:[%s5 + $0x6d8] sm:$0xff] %v2741
  %3113 = vst [vmem:[%s5 + $0x6e0] sm:$0xff] %v2812
  %3114 = vst [vmem:[%s5 + $0x6e8] sm:$0xff] %v2814
  %3115 = vst [vmem:[%s5 + $0x6f0] sm:$0xff] %v2885
  %3116 = vst [vmem:[%s5 + $0x6f8] sm:$0xff] %v2887
  %3117 = vst [vmem:[%s5 + $0x700] sm:$0xff] %v1794
  %3118 = vst [vmem:[%s5 + $0x708] sm:$0xff] %v1796
  %3119 = vst [vmem:[%s5 + $0x710] sm:$0xff] %v1867
  %3120 = vst [vmem:[%s5 + $0x718] sm:$0xff] %v1869
  %3121 = vst [vmem:[%s5 + $0x720] sm:$0xff] %v1940
  %3122 = vst [vmem:[%s5 + $0x728] sm:$0xff] %v1942
  %3123 = vst [vmem:[%s5 + $0x730] sm:$0xff] %v2013
  %3124 = vst [vmem:[%s5 + $0x738] sm:$0xff] %v2015
  %3125 = vst [vmem:[%s5 + $0x740] sm:$0xff] %v2086
  %3126 = vst [vmem:[%s5 + $0x748] sm:$0xff] %v2088
  %3127 = vst [vmem:[%s5 + $0x750] sm:$0xff] %v2159
  %3128 = vst [vmem:[%s5 + $0x758] sm:$0xff] %v2161
  %3129 = vst [vmem:[%s5 + $0x760] sm:$0xff] %v2232
  %3130 = vst [vmem:[%s5 + $0x768] sm:$0xff] %v2234
  %3131 = vst [vmem:[%s5 + $0x770] sm:$0xff] %v2305
  %3132 = vst [vmem:[%s5 + $0x778] sm:$0xff] %v2307
  %3133 = vst [vmem:[%s5 + $0x780] sm:$0xff] %v2378
  %3134 = vst [vmem:[%s5 + $0x788] sm:$0xff] %v2380
  %3135 = vst [vmem:[%s5 + $0x790] sm:$0xff] %v2451
  %3136 = vst [vmem:[%s5 + $0x798] sm:$0xff] %v2453
  %3137 = vst [vmem:[%s5 + $0x7a0] sm:$0xff] %v2524
  %3138 = vst [vmem:[%s5 + $0x7a8] sm:$0xff] %v2526
  %3139 = vst [vmem:[%s5 + $0x7b0] sm:$0xff] %v2597
  %3140 = vst [vmem:[%s5 + $0x7b8] sm:$0xff] %v2599
  %3141 = vst [vmem:[%s5 + $0x7c0] sm:$0xff] %v2670
  %3142 = vst [vmem:[%s5 + $0x7c8] sm:$0xff] %v2672
  %3143 = vst [vmem:[%s5 + $0x7d0] sm:$0xff] %v2743
  %3144 = vst [vmem:[%s5 + $0x7d8] sm:$0xff] %v2745
  %3145 = vst [vmem:[%s5 + $0x7e0] sm:$0xff] %v2816
  %3146 = vst [vmem:[%s5 + $0x7e8] sm:$0xff] %v2818
  %3147 = vst [vmem:[%s5 + $0x7f0] sm:$0xff] %v2889
  %3148 = vst [vmem:[%s5 + $0x7f8] sm:$0xff] %v2891
  // Predicated region
  $region22: #{gfno_encoder.1} parent=0 // pred_check
    _
  $region23: #{gfno_encoder.1} parent=0 // pred_check_branch
    %3150 = sbr.rel (0) target = $region25
  $region24: #{gfno_encoder.1} parent=0 // pred_region
    _
  $region25: #{gfno_encoder.1} parent=0 // pred_fallthru
    _
  // Predicated region
  $region26: #{gfno_encoder.1} parent=0 // pred_check
    _
  $region27: #{gfno_encoder.1} parent=0 // pred_check_branch
    %3152 = sbr.rel (0) target = $region29
  $region28: #{gfno_encoder.1} parent=0 // pred_region
    _
  $region29: #{gfno_encoder.1} parent=0 // pred_fallthru
    _

</llo_original>
